<compile_context>
chip_gen: v7x
topology: tpu7x:2x2x1
jax: 0.10.0
libtpu: 0.0.40
codegen_flags: <defaults>
</compile_context>

<pallas_src>
import functools

import jax
import jax.numpy as jnp
from jax import lax
from jax.experimental import pallas as pl
from jax.experimental.pallas import tpu as pltpu

BN_EPS = 1e-5


# ---------------------------------------------------------------------------
# Static shape metadata per conv block
# ---------------------------------------------------------------------------
def _block_meta(in_channels, input_hw, conv_kernels, conv_strides, conv_paddings, pool_sizes):
    H, W = input_hw
    C = in_channels
    meta = []
    for k, s, p, pk in zip(conv_kernels, conv_strides, conv_paddings, pool_sizes):
        Hp, Wp = H + 2 * p, W + 2 * p
        OH = (Hp - k) // s + 1
        OW = (Wp - k) // s + 1
        OC = C * k * k
        PH = (OH - pk) // pk + 1
        PW = (OW - pk) // pk + 1
        meta.append(dict(H=H, W=W, C=C, Hp=Hp, Wp=Wp, OH=OH, OW=OW, OC=OC,
                         PH=PH, PW=PW, k=k, s=s, p=p, pk=pk, K2C=k * k * C,
                         FH=PH * pk, FW=PW * pk))          # FH/FW = pooled footprint of conv out
        H, W, C = PH, PW, OC
    return meta, (H, W, C)


def _pick_batch_block(n):
    """Bb >= 8 (sublane density), multiple of 8, capped at 64, >=2 grid steps when N allows."""
    bb = 8
    while bb * 2 <= min(64, max(8, n // 2)):
        bb *= 2
    return bb


# ---------------------------------------------------------------------------
# Fused Pallas kernel: Bb samples per grid step, whole forward pass
# ---------------------------------------------------------------------------
def _make_fused_kernel(meta, bb):
    nb = len(meta)

    def kernel(*refs):
        x_ref = refs[0]                                # (FH0*FW0, Bb, K2C0) block-0 patches
        param_refs = refs[1:1 + 2 * nb]                # (w_b, bias_b) per block, BN folded
        fcw_ref = refs[1 + 2 * nb]                     # (flat_dim, num_classes), (h,w,c) row order
        fcb_ref = refs[2 + 2 * nb]                     # (1, num_classes)
        o_ref = refs[3 + 2 * nb]                       # (Bb, num_classes)

        pooled = None                                  # dict (r, c) -> (Bb, OC) value
        for b in range(nb):
            m = meta[b]
            k, s, p, pk = m["k"], m["s"], m["p"], m["pk"]
            nh, nw = m["FH"], m["FW"]                  # only the conv rows/cols the pool consumes
            npos = nh * nw
            w_ref = param_refs[2 * b]                  # (k*k*C, OC), BN scale folded in
            bias_ref = param_refs[2 * b + 1]           # (1, OC), conv bias + BN bias

            # ---- build patch matrix (npos, Bb, K2C) in (di, dj, c) column order ----
            if b == 0:
                patches = x_ref[...]                   # prepared by the wrapper
            else:
                prev = meta[b - 1]
                zero = jnp.zeros((bb, prev["OC"]), jnp.float32)
                rows = []
                for i in range(nh):
                    for j in range(nw):
                        pieces = []
                        for di in range(k):
                            for dj in range(k):
                                rr = s * i + di - p
                                cc = s * j + dj - p
                                inside = (0 <= rr < prev["PH"]) and (0 <= cc < prev["PW"])
                                pieces.append(pooled[(rr, cc)] if inside else zero)
                        rows.append(jnp.concatenate(pieces, axis=-1))     # (Bb, K2C)
                patches = jnp.stack(rows, axis=0)                          # (npos, Bb, K2C)

            # ---- conv (+ folded BN) + ReLU as ONE GEMM over all positions & samples ----
            y = jnp.dot(patches.reshape(npos * bb, m["K2C"]), w_ref[...],
                        preferred_element_type=jnp.float32)
            y = jnp.maximum(y + bias_ref[...], 0.0).reshape(nh, nw, bb, m["OC"])

            # ---- MaxPool2d(pk) (stride == kernel), unrolled over the tiny spatial extent ----
            pooled = {}
            for r in range(m["PH"]):
                for c in range(m["PW"]):
                    v = None
                    for dr in range(pk):
                        for dc in range(pk):
                            t = y[r * pk + dr, c * pk + dc]                # (Bb, OC)
                            v = t if v is None else jnp.maximum(v, t)
                    pooled[(r, c)] = v

        # ---- Flatten in (h, w, c) order + single FC GEMM ----
        last = meta[nb - 1]
        feat = jnp.concatenate(
            [pooled[(r, c)] for r in range(last["PH"]) for c in range(last["PW"])], axis=-1)
        out = jnp.dot(feat, fcw_ref[...], preferred_element_type=jnp.float32) + fcb_ref[...]
        o_ref[...] = out                               # (Bb, num_classes), sublane/lane dense

    return kernel


# ---------------------------------------------------------------------------
# Wrapper helpers
# ---------------------------------------------------------------------------
def _im2col_footprint(x_nhwc, k, s, p, nh, nw):
    """(N,H,W,C) -> (nh*nw, N, k*k*C); columns ordered (di, dj, c); only pooled-footprint rows."""
    N, _, _, C = x_nhwc.shape
    xp = jnp.pad(x_nhwc, ((0, 0), (p, p), (p, p), (0, 0))) if p > 0 else x_nhwc
    cols = []
    for di in range(k):
        for dj in range(k):
            cols.append(lax.slice(xp, (0, di, dj, 0),
                                  (N, di + (nh - 1) * s + 1, dj + (nw - 1) * s + 1, C),
                                  (1, s, s, 1)))                       # (N, nh, nw, C)
    pat = jnp.concatenate(cols, axis=-1)                               # (N, nh, nw, k*k*C)
    return jnp.transpose(pat.reshape(N, nh * nw, k * k * C), (1, 0, 2))


def model_forward(x, params, conv_kernels, conv_strides, conv_paddings, pool_sizes,
                  batch_block=None):
    N, C0, H0, W0 = x.shape
    nb = len(conv_kernels)
    meta, (Hf, Wf, Cf) = _block_meta(C0, (H0, W0), conv_kernels, conv_strides,
                                     conv_paddings, pool_sizes)
    flat_dim = Hf * Wf * Cf
    num_classes = params["fc_b"].shape[0]
    assert params["fc_w"].shape == (num_classes, flat_dim)

    bb = batch_block or _pick_batch_block(N)
    npad = pl.cdiv(N, bb) * bb

    # ---- block-0 patches (layout plumbing only; tiny tensor) ----
    m0 = meta[0]
    x_nhwc = jnp.transpose(x, (0, 2, 3, 1)).astype(jnp.float32)
    patches0 = _im2col_footprint(x_nhwc, m0["k"], m0["s"], m0["p"], m0["FH"], m0["FW"])
    if npad != N:
        patches0 = jnp.pad(patches0, ((0, 0), (0, npad - N), (0, 0)))
    R0 = m0["FH"] * m0["FW"]

    # ---- parameter prep: BN folded into conv weights/bias; FC reordered to (h,w,c) ----
    inputs = [patches0]
    for b in range(nb):
        blk = params["blocks"][b]
        m = meta[b]
        k, C, OC = m["k"], m["C"], m["OC"]
        # (OC, C, k, k) -> rows ordered (di, dj, c) to match patch column order.
        w2 = jnp.transpose(blk["w"], (2, 3, 1, 0)).reshape(k * k * C, OC)
        scale = blk["gamma"] / jnp.sqrt(blk["var"] + BN_EPS)
        inputs.append((w2 * scale[None, :]).astype(jnp.float32))
        inputs.append((blk["beta"] + (blk["b"] - blk["mean"]) * scale)
                      .reshape(1, OC).astype(jnp.float32))
    fcw = jnp.transpose(params["fc_w"].reshape(num_classes, Cf, Hf, Wf), (0, 2, 3, 1))
    inputs.append(fcw.reshape(num_classes, flat_dim).T.astype(jnp.float32))
    inputs.append(params["fc_b"].reshape(1, num_classes).astype(jnp.float32))

    # ---- specs: batch-sliced patches/output, full-array (grid-invariant) parameters ----
    in_specs = [pl.BlockSpec((R0, bb, m0["K2C"]), lambda n: (0, n, 0))]
    for b in range(nb):
        m = meta[b]
        in_specs.append(pl.BlockSpec((m["K2C"], m["OC"]), lambda n: (0, 0)))
        in_specs.append(pl.BlockSpec((1, m["OC"]), lambda n: (0, 0)))
    in_specs.append(pl.BlockSpec((flat_dim, num_classes), lambda n: (0, 0)))
    in_specs.append(pl.BlockSpec((1, num_classes), lambda n: (0, 0)))

    out = pl.pallas_call(
        _make_fused_kernel(meta, bb),
        out_shape=jax.ShapeDtypeStruct((npad, num_classes), jnp.float32),
        grid=(npad // bb,),
        in_specs=in_specs,
        out_specs=pl.BlockSpec((bb, num_classes), lambda n: (n, 0)),
        compiler_params=pltpu.CompilerParams(dimension_semantics=("parallel",)),
    )(*inputs)
    return out[:N]


# ---------------------------------------------------------------------------
# Deterministic parameter init (matches nn.Module shapes)
# ---------------------------------------------------------------------------
def init_params(key, in_channels, num_classes, input_size, ks, ss, ps, pools):
    _, h, w = input_size
    prev_ch = in_channels
    blocks = []
    for i in range(len(ks)):
        k, s, p, pk = ks[i], ss[i], ps[i], pools[i]
        out_ch = prev_ch * k * k
        key, k1, k2, k3, k4, k5, k6 = jax.random.split(key, 7)
        blocks.append(dict(
            w=0.1 * jax.random.normal(k1, (out_ch, prev_ch, k, k), jnp.float32),
            b=0.1 * jax.random.normal(k2, (out_ch,), jnp.float32),
            gamma=jax.random.uniform(k3, (out_ch,), jnp.float32, 0.5, 1.5),
            beta=0.1 * jax.random.normal(k4, (out_ch,), jnp.float32),
            mean=0.1 * jax.random.normal(k5, (out_ch,), jnp.float32),
            var=jax.random.uniform(k6, (out_ch,), jnp.float32, 0.5, 1.5),
        ))
        prev_ch = out_ch
        h = (h + 2 * p - k) // s + 1
        w = (w + 2 * p - k) // s + 1
        h = (h - pk) // pk + 1
        w = (w - pk) // pk + 1
    flat_dim = prev_ch * h * w
    key, k1, k2 = jax.random.split(key, 3)
    return dict(
        blocks=blocks,
        fc_w=0.1 * jax.random.normal(k1, (num_classes, flat_dim), jnp.float32),
        fc_b=0.1 * jax.random.normal(k2, (num_classes,), jnp.float32),
    ), flat_dim


# ---------------------------------------------------------------------------
# Pure-JAX reference (correctness check)
# ---------------------------------------------------------------------------
def reference_forward(x, params, ks, ss, ps, pools):
    for i in range(len(ks)):
        blk = params["blocks"][i]
        k, s, p, pk = ks[i], ss[i], ps[i], pools[i]
        y = lax.conv_general_dilated(
            x, blk["w"], window_strides=(s, s), padding=[(p, p), (p, p)],
            dimension_numbers=("NCHW", "OIHW", "NCHW"),
        ) + blk["b"][None, :, None, None]
        y = (y - blk["mean"][None, :, None, None]) / jnp.sqrt(blk["var"] + BN_EPS)[None, :, None, None]
        y = y * blk["gamma"][None, :, None, None] + blk["beta"][None, :, None, None]
        y = jnp.maximum(y, 0.0)
        y = lax.reduce_window(y, -jnp.inf, lax.max, (1, 1, pk, pk), (1, 1, pk, pk), "VALID")
        x = y
    flat = x.reshape(x.shape[0], -1)
    return flat @ params["fc_w"].T + params["fc_b"][None, :]


# ---------------------------------------------------------------------------
if __name__ == "__main__":
    batch = 2
    in_channels = 1
    input_size = (1, 16, 16)
    conv_kernels = [2, 2]
    conv_strides = [2, 2]
    conv_paddings = [1, 0]
    pool_sizes = [2, 2]
    num_classes = 10

    key = jax.random.PRNGKey(0)
    key, pkey, xkey = jax.random.split(key, 3)
    params, flat_dim = init_params(
        pkey, in_channels, num_classes, input_size,
        conv_kernels, conv_strides, conv_paddings, pool_sizes,
    )
    x = jax.random.normal(xkey, (batch, in_channels, input_size[1], input_size[2]), jnp.float32)

    fwd = jax.jit(functools.partial(
        model_forward,
        conv_kernels=conv_kernels, conv_strides=conv_strides,
        conv_paddings=conv_paddings, pool_sizes=pool_sizes,
    ))
    out = jax.block_until_ready(fwd(x, params))

    ref = reference_forward(x, params, conv_kernels, conv_strides, conv_paddings, pool_sizes)
    assert out.shape == (batch, num_classes), out.shape
    assert jnp.allclose(out, ref, rtol=1e-3, atol=1e-3), (out, ref)

    print("KERNEL_OK")
</pallas_src>

<mosaic_0001>
module attributes {stable_mosaic.version = 11 : i64} {
  func.func @kernel(%arg0: i32, %arg1: memref<64x8x4xf32, #tpu.memory_space<vmem>>, %arg2: memref<4x4xf32, #tpu.memory_space<vmem>>, %arg3: memref<1x4xf32, #tpu.memory_space<vmem>>, %arg4: memref<16x16xf32, #tpu.memory_space<vmem>>, %arg5: memref<1x16xf32, #tpu.memory_space<vmem>>, %arg6: memref<16x10xf32, #tpu.memory_space<vmem>>, %arg7: memref<1x10xf32, #tpu.memory_space<vmem>>, %arg8: memref<8x10xf32, #tpu.memory_space<vmem>>) attributes {dimension_semantics = [#tpu.dimension_semantics<parallel>], iteration_bounds = array<i64: 1>, scalar_prefetch = 0 : i64, scratch_operands = 0 : i64, tpu.core_type = #tpu.core_type<tc>, window_params = [{transform_indices = @transform_0, window_bounds = array<i64: 64, 8, 4>}, {pipeline_mode = #tpu.pipeline_mode<synchronous>, transform_indices = @transform_1, window_bounds = array<i64: 4, 4>}, {pipeline_mode = #tpu.pipeline_mode<synchronous>, transform_indices = @transform_2, window_bounds = array<i64: 1, 4>}, {pipeline_mode = #tpu.pipeline_mode<synchronous>, transform_indices = @transform_3, window_bounds = array<i64: 16, 16>}, {pipeline_mode = #tpu.pipeline_mode<synchronous>, transform_indices = @transform_4, window_bounds = array<i64: 1, 16>}, {pipeline_mode = #tpu.pipeline_mode<synchronous>, transform_indices = @transform_5, window_bounds = array<i64: 16, 10>}, {pipeline_mode = #tpu.pipeline_mode<synchronous>, transform_indices = @transform_6, window_bounds = array<i64: 1, 10>}, {transform_indices = @transform_7, window_bounds = array<i64: 8, 10>}]} {
    %c0 = arith.constant 0 : index
    %c0_0 = arith.constant 0 : index
    %c0_1 = arith.constant 0 : index
    %0 = vector.load %arg1[%c0, %c0_0, %c0_1] : memref<64x8x4xf32, #tpu.memory_space<vmem>>, vector<64x8x4xf32>
    %1 = vector.shape_cast %0 : vector<64x8x4xf32> to vector<512x4xf32>
    %c0_2 = arith.constant 0 : index
    %c0_3 = arith.constant 0 : index
    %2 = vector.load %arg2[%c0_2, %c0_3] : memref<4x4xf32, #tpu.memory_space<vmem>>, vector<4x4xf32>
    %cst = arith.constant dense<0.000000e+00> : vector<512x4xf32>
    %3 = tpu.matmul %1, %2, %cst {dimension_numbers = #tpu.dot_dimension_numbers<[1], [0], [0], [1], [0, 0, 1, 1], [], []>} : vector<512x4xf32>, vector<4x4xf32>, vector<512x4xf32> -> vector<512x4xf32>
    %c0_4 = arith.constant 0 : index
    %c0_5 = arith.constant 0 : index
    %4 = vector.load %arg3[%c0_4, %c0_5] : memref<1x4xf32, #tpu.memory_space<vmem>>, vector<1x4xf32>
    %5 = vector.broadcast %4 : vector<1x4xf32> to vector<512x4xf32>
    %6 = arith.addf %3, %5 : vector<512x4xf32>
    %cst_6 = arith.constant 0.000000e+00 : f32
    %7 = vector.broadcast %cst_6 : f32 to vector<512x4xf32>
    %8 = arith.maximumf %6, %7 : vector<512x4xf32>
    %9 = vector.shape_cast %8 : vector<512x4xf32> to vector<8x8x8x4xf32>
    %10 = vector.extract_strided_slice %9 {offsets = [0, 0, 0, 0], sizes = [1, 1, 8, 4], strides = [1, 1, 1, 1]} : vector<8x8x8x4xf32> to vector<1x1x8x4xf32>
    %11 = vector.shape_cast %10 : vector<1x1x8x4xf32> to vector<8x4xf32>
    %12 = vector.extract_strided_slice %9 {offsets = [0, 1, 0, 0], sizes = [1, 1, 8, 4], strides = [1, 1, 1, 1]} : vector<8x8x8x4xf32> to vector<1x1x8x4xf32>
    %13 = vector.shape_cast %12 : vector<1x1x8x4xf32> to vector<8x4xf32>
    %14 = arith.maximumf %11, %13 : vector<8x4xf32>
    %15 = vector.extract_strided_slice %9 {offsets = [1, 0, 0, 0], sizes = [1, 1, 8, 4], strides = [1, 1, 1, 1]} : vector<8x8x8x4xf32> to vector<1x1x8x4xf32>
    %16 = vector.shape_cast %15 : vector<1x1x8x4xf32> to vector<8x4xf32>
    %17 = arith.maximumf %14, %16 : vector<8x4xf32>
    %18 = vector.extract_strided_slice %9 {offsets = [1, 1, 0, 0], sizes = [1, 1, 8, 4], strides = [1, 1, 1, 1]} : vector<8x8x8x4xf32> to vector<1x1x8x4xf32>
    %19 = vector.shape_cast %18 : vector<1x1x8x4xf32> to vector<8x4xf32>
    %20 = arith.maximumf %17, %19 : vector<8x4xf32>
    %21 = vector.extract_strided_slice %9 {offsets = [0, 2, 0, 0], sizes = [1, 1, 8, 4], strides = [1, 1, 1, 1]} : vector<8x8x8x4xf32> to vector<1x1x8x4xf32>
    %22 = vector.shape_cast %21 : vector<1x1x8x4xf32> to vector<8x4xf32>
    %23 = vector.extract_strided_slice %9 {offsets = [0, 3, 0, 0], sizes = [1, 1, 8, 4], strides = [1, 1, 1, 1]} : vector<8x8x8x4xf32> to vector<1x1x8x4xf32>
    %24 = vector.shape_cast %23 : vector<1x1x8x4xf32> to vector<8x4xf32>
    %25 = arith.maximumf %22, %24 : vector<8x4xf32>
    %26 = vector.extract_strided_slice %9 {offsets = [1, 2, 0, 0], sizes = [1, 1, 8, 4], strides = [1, 1, 1, 1]} : vector<8x8x8x4xf32> to vector<1x1x8x4xf32>
    %27 = vector.shape_cast %26 : vector<1x1x8x4xf32> to vector<8x4xf32>
    %28 = arith.maximumf %25, %27 : vector<8x4xf32>
    %29 = vector.extract_strided_slice %9 {offsets = [1, 3, 0, 0], sizes = [1, 1, 8, 4], strides = [1, 1, 1, 1]} : vector<8x8x8x4xf32> to vector<1x1x8x4xf32>
    %30 = vector.shape_cast %29 : vector<1x1x8x4xf32> to vector<8x4xf32>
    %31 = arith.maximumf %28, %30 : vector<8x4xf32>
    %32 = vector.extract_strided_slice %9 {offsets = [0, 4, 0, 0], sizes = [1, 1, 8, 4], strides = [1, 1, 1, 1]} : vector<8x8x8x4xf32> to vector<1x1x8x4xf32>
    %33 = vector.shape_cast %32 : vector<1x1x8x4xf32> to vector<8x4xf32>
    %34 = vector.extract_strided_slice %9 {offsets = [0, 5, 0, 0], sizes = [1, 1, 8, 4], strides = [1, 1, 1, 1]} : vector<8x8x8x4xf32> to vector<1x1x8x4xf32>
    %35 = vector.shape_cast %34 : vector<1x1x8x4xf32> to vector<8x4xf32>
    %36 = arith.maximumf %33, %35 : vector<8x4xf32>
    %37 = vector.extract_strided_slice %9 {offsets = [1, 4, 0, 0], sizes = [1, 1, 8, 4], strides = [1, 1, 1, 1]} : vector<8x8x8x4xf32> to vector<1x1x8x4xf32>
    %38 = vector.shape_cast %37 : vector<1x1x8x4xf32> to vector<8x4xf32>
    %39 = arith.maximumf %36, %38 : vector<8x4xf32>
    %40 = vector.extract_strided_slice %9 {offsets = [1, 5, 0, 0], sizes = [1, 1, 8, 4], strides = [1, 1, 1, 1]} : vector<8x8x8x4xf32> to vector<1x1x8x4xf32>
    %41 = vector.shape_cast %40 : vector<1x1x8x4xf32> to vector<8x4xf32>
    %42 = arith.maximumf %39, %41 : vector<8x4xf32>
    %43 = vector.extract_strided_slice %9 {offsets = [0, 6, 0, 0], sizes = [1, 1, 8, 4], strides = [1, 1, 1, 1]} : vector<8x8x8x4xf32> to vector<1x1x8x4xf32>
    %44 = vector.shape_cast %43 : vector<1x1x8x4xf32> to vector<8x4xf32>
    %45 = vector.extract_strided_slice %9 {offsets = [0, 7, 0, 0], sizes = [1, 1, 8, 4], strides = [1, 1, 1, 1]} : vector<8x8x8x4xf32> to vector<1x1x8x4xf32>
    %46 = vector.shape_cast %45 : vector<1x1x8x4xf32> to vector<8x4xf32>
    %47 = arith.maximumf %44, %46 : vector<8x4xf32>
    %48 = vector.extract_strided_slice %9 {offsets = [1, 6, 0, 0], sizes = [1, 1, 8, 4], strides = [1, 1, 1, 1]} : vector<8x8x8x4xf32> to vector<1x1x8x4xf32>
    %49 = vector.shape_cast %48 : vector<1x1x8x4xf32> to vector<8x4xf32>
    %50 = arith.maximumf %47, %49 : vector<8x4xf32>
    %51 = vector.extract_strided_slice %9 {offsets = [1, 7, 0, 0], sizes = [1, 1, 8, 4], strides = [1, 1, 1, 1]} : vector<8x8x8x4xf32> to vector<1x1x8x4xf32>
    %52 = vector.shape_cast %51 : vector<1x1x8x4xf32> to vector<8x4xf32>
    %53 = arith.maximumf %50, %52 : vector<8x4xf32>
    %54 = vector.extract_strided_slice %9 {offsets = [2, 0, 0, 0], sizes = [1, 1, 8, 4], strides = [1, 1, 1, 1]} : vector<8x8x8x4xf32> to vector<1x1x8x4xf32>
    %55 = vector.shape_cast %54 : vector<1x1x8x4xf32> to vector<8x4xf32>
    %56 = vector.extract_strided_slice %9 {offsets = [2, 1, 0, 0], sizes = [1, 1, 8, 4], strides = [1, 1, 1, 1]} : vector<8x8x8x4xf32> to vector<1x1x8x4xf32>
    %57 = vector.shape_cast %56 : vector<1x1x8x4xf32> to vector<8x4xf32>
    %58 = arith.maximumf %55, %57 : vector<8x4xf32>
    %59 = vector.extract_strided_slice %9 {offsets = [3, 0, 0, 0], sizes = [1, 1, 8, 4], strides = [1, 1, 1, 1]} : vector<8x8x8x4xf32> to vector<1x1x8x4xf32>
    %60 = vector.shape_cast %59 : vector<1x1x8x4xf32> to vector<8x4xf32>
    %61 = arith.maximumf %58, %60 : vector<8x4xf32>
    %62 = vector.extract_strided_slice %9 {offsets = [3, 1, 0, 0], sizes = [1, 1, 8, 4], strides = [1, 1, 1, 1]} : vector<8x8x8x4xf32> to vector<1x1x8x4xf32>
    %63 = vector.shape_cast %62 : vector<1x1x8x4xf32> to vector<8x4xf32>
    %64 = arith.maximumf %61, %63 : vector<8x4xf32>
    %65 = vector.extract_strided_slice %9 {offsets = [2, 2, 0, 0], sizes = [1, 1, 8, 4], strides = [1, 1, 1, 1]} : vector<8x8x8x4xf32> to vector<1x1x8x4xf32>
    %66 = vector.shape_cast %65 : vector<1x1x8x4xf32> to vector<8x4xf32>
    %67 = vector.extract_strided_slice %9 {offsets = [2, 3, 0, 0], sizes = [1, 1, 8, 4], strides = [1, 1, 1, 1]} : vector<8x8x8x4xf32> to vector<1x1x8x4xf32>
    %68 = vector.shape_cast %67 : vector<1x1x8x4xf32> to vector<8x4xf32>
    %69 = arith.maximumf %66, %68 : vector<8x4xf32>
    %70 = vector.extract_strided_slice %9 {offsets = [3, 2, 0, 0], sizes = [1, 1, 8, 4], strides = [1, 1, 1, 1]} : vector<8x8x8x4xf32> to vector<1x1x8x4xf32>
    %71 = vector.shape_cast %70 : vector<1x1x8x4xf32> to vector<8x4xf32>
    %72 = arith.maximumf %69, %71 : vector<8x4xf32>
    %73 = vector.extract_strided_slice %9 {offsets = [3, 3, 0, 0], sizes = [1, 1, 8, 4], strides = [1, 1, 1, 1]} : vector<8x8x8x4xf32> to vector<1x1x8x4xf32>
    %74 = vector.shape_cast %73 : vector<1x1x8x4xf32> to vector<8x4xf32>
    %75 = arith.maximumf %72, %74 : vector<8x4xf32>
    %76 = vector.extract_strided_slice %9 {offsets = [2, 4, 0, 0], sizes = [1, 1, 8, 4], strides = [1, 1, 1, 1]} : vector<8x8x8x4xf32> to vector<1x1x8x4xf32>
    %77 = vector.shape_cast %76 : vector<1x1x8x4xf32> to vector<8x4xf32>
    %78 = vector.extract_strided_slice %9 {offsets = [2, 5, 0, 0], sizes = [1, 1, 8, 4], strides = [1, 1, 1, 1]} : vector<8x8x8x4xf32> to vector<1x1x8x4xf32>
    %79 = vector.shape_cast %78 : vector<1x1x8x4xf32> to vector<8x4xf32>
    %80 = arith.maximumf %77, %79 : vector<8x4xf32>
    %81 = vector.extract_strided_slice %9 {offsets = [3, 4, 0, 0], sizes = [1, 1, 8, 4], strides = [1, 1, 1, 1]} : vector<8x8x8x4xf32> to vector<1x1x8x4xf32>
    %82 = vector.shape_cast %81 : vector<1x1x8x4xf32> to vector<8x4xf32>
    %83 = arith.maximumf %80, %82 : vector<8x4xf32>
    %84 = vector.extract_strided_slice %9 {offsets = [3, 5, 0, 0], sizes = [1, 1, 8, 4], strides = [1, 1, 1, 1]} : vector<8x8x8x4xf32> to vector<1x1x8x4xf32>
    %85 = vector.shape_cast %84 : vector<1x1x8x4xf32> to vector<8x4xf32>
    %86 = arith.maximumf %83, %85 : vector<8x4xf32>
    %87 = vector.extract_strided_slice %9 {offsets = [2, 6, 0, 0], sizes = [1, 1, 8, 4], strides = [1, 1, 1, 1]} : vector<8x8x8x4xf32> to vector<1x1x8x4xf32>
    %88 = vector.shape_cast %87 : vector<1x1x8x4xf32> to vector<8x4xf32>
    %89 = vector.extract_strided_slice %9 {offsets = [2, 7, 0, 0], sizes = [1, 1, 8, 4], strides = [1, 1, 1, 1]} : vector<8x8x8x4xf32> to vector<1x1x8x4xf32>
    %90 = vector.shape_cast %89 : vector<1x1x8x4xf32> to vector<8x4xf32>
    %91 = arith.maximumf %88, %90 : vector<8x4xf32>
    %92 = vector.extract_strided_slice %9 {offsets = [3, 6, 0, 0], sizes = [1, 1, 8, 4], strides = [1, 1, 1, 1]} : vector<8x8x8x4xf32> to vector<1x1x8x4xf32>
    %93 = vector.shape_cast %92 : vector<1x1x8x4xf32> to vector<8x4xf32>
    %94 = arith.maximumf %91, %93 : vector<8x4xf32>
    %95 = vector.extract_strided_slice %9 {offsets = [3, 7, 0, 0], sizes = [1, 1, 8, 4], strides = [1, 1, 1, 1]} : vector<8x8x8x4xf32> to vector<1x1x8x4xf32>
    %96 = vector.shape_cast %95 : vector<1x1x8x4xf32> to vector<8x4xf32>
    %97 = arith.maximumf %94, %96 : vector<8x4xf32>
    %98 = vector.extract_strided_slice %9 {offsets = [4, 0, 0, 0], sizes = [1, 1, 8, 4], strides = [1, 1, 1, 1]} : vector<8x8x8x4xf32> to vector<1x1x8x4xf32>
    %99 = vector.shape_cast %98 : vector<1x1x8x4xf32> to vector<8x4xf32>
    %100 = vector.extract_strided_slice %9 {offsets = [4, 1, 0, 0], sizes = [1, 1, 8, 4], strides = [1, 1, 1, 1]} : vector<8x8x8x4xf32> to vector<1x1x8x4xf32>
    %101 = vector.shape_cast %100 : vector<1x1x8x4xf32> to vector<8x4xf32>
    %102 = arith.maximumf %99, %101 : vector<8x4xf32>
    %103 = vector.extract_strided_slice %9 {offsets = [5, 0, 0, 0], sizes = [1, 1, 8, 4], strides = [1, 1, 1, 1]} : vector<8x8x8x4xf32> to vector<1x1x8x4xf32>
    %104 = vector.shape_cast %103 : vector<1x1x8x4xf32> to vector<8x4xf32>
    %105 = arith.maximumf %102, %104 : vector<8x4xf32>
    %106 = vector.extract_strided_slice %9 {offsets = [5, 1, 0, 0], sizes = [1, 1, 8, 4], strides = [1, 1, 1, 1]} : vector<8x8x8x4xf32> to vector<1x1x8x4xf32>
    %107 = vector.shape_cast %106 : vector<1x1x8x4xf32> to vector<8x4xf32>
    %108 = arith.maximumf %105, %107 : vector<8x4xf32>
    %109 = vector.extract_strided_slice %9 {offsets = [4, 2, 0, 0], sizes = [1, 1, 8, 4], strides = [1, 1, 1, 1]} : vector<8x8x8x4xf32> to vector<1x1x8x4xf32>
    %110 = vector.shape_cast %109 : vector<1x1x8x4xf32> to vector<8x4xf32>
    %111 = vector.extract_strided_slice %9 {offsets = [4, 3, 0, 0], sizes = [1, 1, 8, 4], strides = [1, 1, 1, 1]} : vector<8x8x8x4xf32> to vector<1x1x8x4xf32>
    %112 = vector.shape_cast %111 : vector<1x1x8x4xf32> to vector<8x4xf32>
    %113 = arith.maximumf %110, %112 : vector<8x4xf32>
    %114 = vector.extract_strided_slice %9 {offsets = [5, 2, 0, 0], sizes = [1, 1, 8, 4], strides = [1, 1, 1, 1]} : vector<8x8x8x4xf32> to vector<1x1x8x4xf32>
    %115 = vector.shape_cast %114 : vector<1x1x8x4xf32> to vector<8x4xf32>
    %116 = arith.maximumf %113, %115 : vector<8x4xf32>
    %117 = vector.extract_strided_slice %9 {offsets = [5, 3, 0, 0], sizes = [1, 1, 8, 4], strides = [1, 1, 1, 1]} : vector<8x8x8x4xf32> to vector<1x1x8x4xf32>
    %118 = vector.shape_cast %117 : vector<1x1x8x4xf32> to vector<8x4xf32>
    %119 = arith.maximumf %116, %118 : vector<8x4xf32>
    %120 = vector.extract_strided_slice %9 {offsets = [4, 4, 0, 0], sizes = [1, 1, 8, 4], strides = [1, 1, 1, 1]} : vector<8x8x8x4xf32> to vector<1x1x8x4xf32>
    %121 = vector.shape_cast %120 : vector<1x1x8x4xf32> to vector<8x4xf32>
    %122 = vector.extract_strided_slice %9 {offsets = [4, 5, 0, 0], sizes = [1, 1, 8, 4], strides = [1, 1, 1, 1]} : vector<8x8x8x4xf32> to vector<1x1x8x4xf32>
    %123 = vector.shape_cast %122 : vector<1x1x8x4xf32> to vector<8x4xf32>
    %124 = arith.maximumf %121, %123 : vector<8x4xf32>
    %125 = vector.extract_strided_slice %9 {offsets = [5, 4, 0, 0], sizes = [1, 1, 8, 4], strides = [1, 1, 1, 1]} : vector<8x8x8x4xf32> to vector<1x1x8x4xf32>
    %126 = vector.shape_cast %125 : vector<1x1x8x4xf32> to vector<8x4xf32>
    %127 = arith.maximumf %124, %126 : vector<8x4xf32>
    %128 = vector.extract_strided_slice %9 {offsets = [5, 5, 0, 0], sizes = [1, 1, 8, 4], strides = [1, 1, 1, 1]} : vector<8x8x8x4xf32> to vector<1x1x8x4xf32>
    %129 = vector.shape_cast %128 : vector<1x1x8x4xf32> to vector<8x4xf32>
    %130 = arith.maximumf %127, %129 : vector<8x4xf32>
    %131 = vector.extract_strided_slice %9 {offsets = [4, 6, 0, 0], sizes = [1, 1, 8, 4], strides = [1, 1, 1, 1]} : vector<8x8x8x4xf32> to vector<1x1x8x4xf32>
    %132 = vector.shape_cast %131 : vector<1x1x8x4xf32> to vector<8x4xf32>
    %133 = vector.extract_strided_slice %9 {offsets = [4, 7, 0, 0], sizes = [1, 1, 8, 4], strides = [1, 1, 1, 1]} : vector<8x8x8x4xf32> to vector<1x1x8x4xf32>
    %134 = vector.shape_cast %133 : vector<1x1x8x4xf32> to vector<8x4xf32>
    %135 = arith.maximumf %132, %134 : vector<8x4xf32>
    %136 = vector.extract_strided_slice %9 {offsets = [5, 6, 0, 0], sizes = [1, 1, 8, 4], strides = [1, 1, 1, 1]} : vector<8x8x8x4xf32> to vector<1x1x8x4xf32>
    %137 = vector.shape_cast %136 : vector<1x1x8x4xf32> to vector<8x4xf32>
    %138 = arith.maximumf %135, %137 : vector<8x4xf32>
    %139 = vector.extract_strided_slice %9 {offsets = [5, 7, 0, 0], sizes = [1, 1, 8, 4], strides = [1, 1, 1, 1]} : vector<8x8x8x4xf32> to vector<1x1x8x4xf32>
    %140 = vector.shape_cast %139 : vector<1x1x8x4xf32> to vector<8x4xf32>
    %141 = arith.maximumf %138, %140 : vector<8x4xf32>
    %142 = vector.extract_strided_slice %9 {offsets = [6, 0, 0, 0], sizes = [1, 1, 8, 4], strides = [1, 1, 1, 1]} : vector<8x8x8x4xf32> to vector<1x1x8x4xf32>
    %143 = vector.shape_cast %142 : vector<1x1x8x4xf32> to vector<8x4xf32>
    %144 = vector.extract_strided_slice %9 {offsets = [6, 1, 0, 0], sizes = [1, 1, 8, 4], strides = [1, 1, 1, 1]} : vector<8x8x8x4xf32> to vector<1x1x8x4xf32>
    %145 = vector.shape_cast %144 : vector<1x1x8x4xf32> to vector<8x4xf32>
    %146 = arith.maximumf %143, %145 : vector<8x4xf32>
    %147 = vector.extract_strided_slice %9 {offsets = [7, 0, 0, 0], sizes = [1, 1, 8, 4], strides = [1, 1, 1, 1]} : vector<8x8x8x4xf32> to vector<1x1x8x4xf32>
    %148 = vector.shape_cast %147 : vector<1x1x8x4xf32> to vector<8x4xf32>
    %149 = arith.maximumf %146, %148 : vector<8x4xf32>
    %150 = vector.extract_strided_slice %9 {offsets = [7, 1, 0, 0], sizes = [1, 1, 8, 4], strides = [1, 1, 1, 1]} : vector<8x8x8x4xf32> to vector<1x1x8x4xf32>
    %151 = vector.shape_cast %150 : vector<1x1x8x4xf32> to vector<8x4xf32>
    %152 = arith.maximumf %149, %151 : vector<8x4xf32>
    %153 = vector.extract_strided_slice %9 {offsets = [6, 2, 0, 0], sizes = [1, 1, 8, 4], strides = [1, 1, 1, 1]} : vector<8x8x8x4xf32> to vector<1x1x8x4xf32>
    %154 = vector.shape_cast %153 : vector<1x1x8x4xf32> to vector<8x4xf32>
    %155 = vector.extract_strided_slice %9 {offsets = [6, 3, 0, 0], sizes = [1, 1, 8, 4], strides = [1, 1, 1, 1]} : vector<8x8x8x4xf32> to vector<1x1x8x4xf32>
    %156 = vector.shape_cast %155 : vector<1x1x8x4xf32> to vector<8x4xf32>
    %157 = arith.maximumf %154, %156 : vector<8x4xf32>
    %158 = vector.extract_strided_slice %9 {offsets = [7, 2, 0, 0], sizes = [1, 1, 8, 4], strides = [1, 1, 1, 1]} : vector<8x8x8x4xf32> to vector<1x1x8x4xf32>
    %159 = vector.shape_cast %158 : vector<1x1x8x4xf32> to vector<8x4xf32>
    %160 = arith.maximumf %157, %159 : vector<8x4xf32>
    %161 = vector.extract_strided_slice %9 {offsets = [7, 3, 0, 0], sizes = [1, 1, 8, 4], strides = [1, 1, 1, 1]} : vector<8x8x8x4xf32> to vector<1x1x8x4xf32>
    %162 = vector.shape_cast %161 : vector<1x1x8x4xf32> to vector<8x4xf32>
    %163 = arith.maximumf %160, %162 : vector<8x4xf32>
    %164 = vector.extract_strided_slice %9 {offsets = [6, 4, 0, 0], sizes = [1, 1, 8, 4], strides = [1, 1, 1, 1]} : vector<8x8x8x4xf32> to vector<1x1x8x4xf32>
    %165 = vector.shape_cast %164 : vector<1x1x8x4xf32> to vector<8x4xf32>
    %166 = vector.extract_strided_slice %9 {offsets = [6, 5, 0, 0], sizes = [1, 1, 8, 4], strides = [1, 1, 1, 1]} : vector<8x8x8x4xf32> to vector<1x1x8x4xf32>
    %167 = vector.shape_cast %166 : vector<1x1x8x4xf32> to vector<8x4xf32>
    %168 = arith.maximumf %165, %167 : vector<8x4xf32>
    %169 = vector.extract_strided_slice %9 {offsets = [7, 4, 0, 0], sizes = [1, 1, 8, 4], strides = [1, 1, 1, 1]} : vector<8x8x8x4xf32> to vector<1x1x8x4xf32>
    %170 = vector.shape_cast %169 : vector<1x1x8x4xf32> to vector<8x4xf32>
    %171 = arith.maximumf %168, %170 : vector<8x4xf32>
    %172 = vector.extract_strided_slice %9 {offsets = [7, 5, 0, 0], sizes = [1, 1, 8, 4], strides = [1, 1, 1, 1]} : vector<8x8x8x4xf32> to vector<1x1x8x4xf32>
    %173 = vector.shape_cast %172 : vector<1x1x8x4xf32> to vector<8x4xf32>
    %174 = arith.maximumf %171, %173 : vector<8x4xf32>
    %175 = vector.extract_strided_slice %9 {offsets = [6, 6, 0, 0], sizes = [1, 1, 8, 4], strides = [1, 1, 1, 1]} : vector<8x8x8x4xf32> to vector<1x1x8x4xf32>
    %176 = vector.shape_cast %175 : vector<1x1x8x4xf32> to vector<8x4xf32>
    %177 = vector.extract_strided_slice %9 {offsets = [6, 7, 0, 0], sizes = [1, 1, 8, 4], strides = [1, 1, 1, 1]} : vector<8x8x8x4xf32> to vector<1x1x8x4xf32>
    %178 = vector.shape_cast %177 : vector<1x1x8x4xf32> to vector<8x4xf32>
    %179 = arith.maximumf %176, %178 : vector<8x4xf32>
    %180 = vector.extract_strided_slice %9 {offsets = [7, 6, 0, 0], sizes = [1, 1, 8, 4], strides = [1, 1, 1, 1]} : vector<8x8x8x4xf32> to vector<1x1x8x4xf32>
    %181 = vector.shape_cast %180 : vector<1x1x8x4xf32> to vector<8x4xf32>
    %182 = arith.maximumf %179, %181 : vector<8x4xf32>
    %183 = vector.extract_strided_slice %9 {offsets = [7, 7, 0, 0], sizes = [1, 1, 8, 4], strides = [1, 1, 1, 1]} : vector<8x8x8x4xf32> to vector<1x1x8x4xf32>
    %184 = vector.shape_cast %183 : vector<1x1x8x4xf32> to vector<8x4xf32>
    %185 = arith.maximumf %182, %184 : vector<8x4xf32>
    %186 = tpu.concatenate %20, %31, %64, %75 in 1 : vector<8x4xf32>, vector<8x4xf32>, vector<8x4xf32>, vector<8x4xf32> -> vector<8x16xf32>
    %187 = tpu.concatenate %42, %53, %86, %97 in 1 : vector<8x4xf32>, vector<8x4xf32>, vector<8x4xf32>, vector<8x4xf32> -> vector<8x16xf32>
    %188 = tpu.concatenate %108, %119, %152, %163 in 1 : vector<8x4xf32>, vector<8x4xf32>, vector<8x4xf32>, vector<8x4xf32> -> vector<8x16xf32>
    %189 = tpu.concatenate %130, %141, %174, %185 in 1 : vector<8x4xf32>, vector<8x4xf32>, vector<8x4xf32>, vector<8x4xf32> -> vector<8x16xf32>
    %190 = vector.shape_cast %186 : vector<8x16xf32> to vector<1x8x16xf32>
    %191 = vector.shape_cast %187 : vector<8x16xf32> to vector<1x8x16xf32>
    %192 = vector.shape_cast %188 : vector<8x16xf32> to vector<1x8x16xf32>
    %193 = vector.shape_cast %189 : vector<8x16xf32> to vector<1x8x16xf32>
    %194 = tpu.concatenate %190, %191, %192, %193 in 0 : vector<1x8x16xf32>, vector<1x8x16xf32>, vector<1x8x16xf32>, vector<1x8x16xf32> -> vector<4x8x16xf32>
    %195 = vector.shape_cast %194 : vector<4x8x16xf32> to vector<32x16xf32>
    %c0_7 = arith.constant 0 : index
    %c0_8 = arith.constant 0 : index
    %196 = vector.load %arg4[%c0_7, %c0_8] : memref<16x16xf32, #tpu.memory_space<vmem>>, vector<16x16xf32>
    %cst_9 = arith.constant dense<0.000000e+00> : vector<32x16xf32>
    %197 = tpu.matmul %195, %196, %cst_9 {dimension_numbers = #tpu.dot_dimension_numbers<[1], [0], [0], [1], [0, 0, 1, 1], [], []>} : vector<32x16xf32>, vector<16x16xf32>, vector<32x16xf32> -> vector<32x16xf32>
    %c0_10 = arith.constant 0 : index
    %c0_11 = arith.constant 0 : index
    %198 = vector.load %arg5[%c0_10, %c0_11] : memref<1x16xf32, #tpu.memory_space<vmem>>, vector<1x16xf32>
    %199 = vector.broadcast %198 : vector<1x16xf32> to vector<32x16xf32>
    %200 = arith.addf %197, %199 : vector<32x16xf32>
    %cst_12 = arith.constant 0.000000e+00 : f32
    %201 = vector.broadcast %cst_12 : f32 to vector<32x16xf32>
    %202 = arith.maximumf %200, %201 : vector<32x16xf32>
    %203 = vector.shape_cast %202 : vector<32x16xf32> to vector<2x2x8x16xf32>
    %204 = vector.extract_strided_slice %203 {offsets = [0, 0, 0, 0], sizes = [1, 1, 8, 16], strides = [1, 1, 1, 1]} : vector<2x2x8x16xf32> to vector<1x1x8x16xf32>
    %205 = vector.shape_cast %204 : vector<1x1x8x16xf32> to vector<8x16xf32>
    %206 = vector.extract_strided_slice %203 {offsets = [0, 1, 0, 0], sizes = [1, 1, 8, 16], strides = [1, 1, 1, 1]} : vector<2x2x8x16xf32> to vector<1x1x8x16xf32>
    %207 = vector.shape_cast %206 : vector<1x1x8x16xf32> to vector<8x16xf32>
    %208 = arith.maximumf %205, %207 : vector<8x16xf32>
    %209 = vector.extract_strided_slice %203 {offsets = [1, 0, 0, 0], sizes = [1, 1, 8, 16], strides = [1, 1, 1, 1]} : vector<2x2x8x16xf32> to vector<1x1x8x16xf32>
    %210 = vector.shape_cast %209 : vector<1x1x8x16xf32> to vector<8x16xf32>
    %211 = arith.maximumf %208, %210 : vector<8x16xf32>
    %212 = vector.extract_strided_slice %203 {offsets = [1, 1, 0, 0], sizes = [1, 1, 8, 16], strides = [1, 1, 1, 1]} : vector<2x2x8x16xf32> to vector<1x1x8x16xf32>
    %213 = vector.shape_cast %212 : vector<1x1x8x16xf32> to vector<8x16xf32>
    %214 = arith.maximumf %211, %213 : vector<8x16xf32>
    %c0_13 = arith.constant 0 : index
    %c0_14 = arith.constant 0 : index
    %215 = vector.load %arg6[%c0_13, %c0_14] : memref<16x10xf32, #tpu.memory_space<vmem>>, vector<16x10xf32>
    %cst_15 = arith.constant dense<0.000000e+00> : vector<8x10xf32>
    %216 = tpu.matmul %214, %215, %cst_15 {dimension_numbers = #tpu.dot_dimension_numbers<[1], [0], [0], [1], [0, 0, 1, 1], [], []>} : vector<8x16xf32>, vector<16x10xf32>, vector<8x10xf32> -> vector<8x10xf32>
    %c0_16 = arith.constant 0 : index
    %c0_17 = arith.constant 0 : index
    %217 = vector.load %arg7[%c0_16, %c0_17] : memref<1x10xf32, #tpu.memory_space<vmem>>, vector<1x10xf32>
    %218 = vector.broadcast %217 : vector<1x10xf32> to vector<8x10xf32>
    %219 = arith.addf %216, %218 : vector<8x10xf32>
    %c0_18 = arith.constant 0 : index
    %c0_19 = arith.constant 0 : index
    %220 = vector.load %arg8[%c0_18, %c0_19] : memref<8x10xf32, #tpu.memory_space<vmem>>, vector<8x10xf32>
    tpu.vector_store %arg8[%c0_18, %c0_19], %219 {strides = array<i32>} : memref<8x10xf32, #tpu.memory_space<vmem>>, vector<8x10xf32>,
    return
  }
  func.func @transform_0(%arg0: i32) -> (i32, i32, i32) {
    %c0_i32 = arith.constant 0 : i32
    %c0_i32_0 = arith.constant 0 : i32
    %c0_i32_1 = arith.constant 0 : i32
    return %c0_i32, %arg0, %c0_i32_0 : i32, i32, i32
  }
  func.func @transform_1(%arg0: i32) -> (i32, i32) {
    %c0_i32 = arith.constant 0 : i32
    %c0_i32_0 = arith.constant 0 : i32
    %c0_i32_1 = arith.constant 0 : i32
    return %c0_i32, %c0_i32_0 : i32, i32
  }
  func.func @transform_2(%arg0: i32) -> (i32, i32) {
    %c0_i32 = arith.constant 0 : i32
    %c0_i32_0 = arith.constant 0 : i32
    %c0_i32_1 = arith.constant 0 : i32
    return %c0_i32, %c0_i32_0 : i32, i32
  }
  func.func @transform_3(%arg0: i32) -> (i32, i32) {
    %c0_i32 = arith.constant 0 : i32
    %c0_i32_0 = arith.constant 0 : i32
    %c0_i32_1 = arith.constant 0 : i32
    return %c0_i32, %c0_i32_0 : i32, i32
  }
  func.func @transform_4(%arg0: i32) -> (i32, i32) {
    %c0_i32 = arith.constant 0 : i32
    %c0_i32_0 = arith.constant 0 : i32
    %c0_i32_1 = arith.constant 0 : i32
    return %c0_i32, %c0_i32_0 : i32, i32
  }
  func.func @transform_5(%arg0: i32) -> (i32, i32) {
    %c0_i32 = arith.constant 0 : i32
    %c0_i32_0 = arith.constant 0 : i32
    %c0_i32_1 = arith.constant 0 : i32
    return %c0_i32, %c0_i32_0 : i32, i32
  }
  func.func @transform_6(%arg0: i32) -> (i32, i32) {
    %c0_i32 = arith.constant 0 : i32
    %c0_i32_0 = arith.constant 0 : i32
    %c0_i32_1 = arith.constant 0 : i32
    return %c0_i32, %c0_i32_0 : i32, i32
  }
  func.func @transform_7(%arg0: i32) -> (i32, i32) {
    %c0_i32 = arith.constant 0 : i32
    %c0_i32_0 = arith.constant 0 : i32
    return %arg0, %c0_i32 : i32, i32
  }
}

</mosaic_0001>

<llo_original>
// kernel: model_forward.1
$region0: #{model_forward.1}
  #allocation0 [shape = 'u32[]', space=smem, size = 0x4, offset = 0x4, fixed_abs, tag = 'smem constant byte address 0x4 - core index']
  #allocation1 [shape = 'u32[144,128]{1,0:T(1,128)}', space=vmem, size = 0x12000, scoped, tag = 'internal scratch']
  %s0 = inlined_call_operand.vmem [shape: f32[64,8,4], index: 0, kind: input, shape index: {}]
  %s1 = inlined_call_operand.vmem [shape: f32[4,4], index: 1, kind: input, shape index: {}]
  %s2 = inlined_call_operand.vmem [shape: f32[1,4], index: 2, kind: input, shape index: {}]
  %s3 = inlined_call_operand.vmem [shape: f32[16,16], index: 3, kind: input, shape index: {}]
  %s4 = inlined_call_operand.vmem [shape: f32[1,16], index: 4, kind: input, shape index: {}]
  %s5 = inlined_call_operand.vmem [shape: f32[16,10], index: 5, kind: input, shape index: {}]
  %s6 = inlined_call_operand.vmem [shape: f32[1,10], index: 6, kind: input, shape index: {}]
  %s7 = inlined_call_operand.vmem [shape: f32[8,10], index: 7, kind: output, shape index: {}]
  %s8 = sld [smem:[#allocation0]]
  $region38: #{model_forward.1} parent=0
    _
  %s10 = ssub.s32 1, %s8
  %s11 = scalar_select 0, %s10, %s8
  // Predicated region
  $region2: #{model_forward.1} parent=0 // pred_check
    _
  $region3: #{model_forward.1} parent=0 // pred_check_branch
    %13 = sbr.rel (0) target = $region5
  $region4: #{model_forward.1} parent=0 // pred_region
    _
  $region5: #{model_forward.1} parent=0 // pred_fallthru
    _
  // Predicated region
  $region6: #{model_forward.1} parent=0 // pred_check
    _
  $region7: #{model_forward.1} parent=0 // pred_check_branch
    %15 = sbr.rel (0) target = $region9
  $region8: #{model_forward.1} parent=0 // pred_region
    _
  $region9: #{model_forward.1} parent=0 // pred_fallthru
    _
  // Predicated region
  $region10: #{model_forward.1} parent=0 // pred_check
    _
  $region11: #{model_forward.1} parent=0 // pred_check_branch
    %17 = sbr.rel (0) target = $region13
  $region12: #{model_forward.1} parent=0 // pred_region
    _
  $region13: #{model_forward.1} parent=0 // pred_fallthru
    _
  // Predicated region
  $region14: #{model_forward.1} parent=0 // pred_check
    _
  $region15: #{model_forward.1} parent=0 // pred_check_branch
    %19 = sbr.rel (0) target = $region17
  $region16: #{model_forward.1} parent=0 // pred_region
    _
  $region17: #{model_forward.1} parent=0 // pred_fallthru
    _
  // Predicated region
  $region18: #{model_forward.1} parent=0 // pred_check
    _
  $region19: #{model_forward.1} parent=0 // pred_check_branch
    %21 = sbr.rel (0) target = $region21
  $region20: #{model_forward.1} parent=0 // pred_region
    _
  $region21: #{model_forward.1} parent=0 // pred_fallthru
    _
  // Predicated region
  $region22: #{model_forward.1} parent=0 // pred_check
    _
  $region23: #{model_forward.1} parent=0 // pred_check_branch
    %23 = sbr.rel (0) target = $region25
  $region24: #{model_forward.1} parent=0 // pred_region
    _
  $region25: #{model_forward.1} parent=0 // pred_fallthru
    _
  // Predicated region
  $region26: #{model_forward.1} parent=0 // pred_check
    _
  $region27: #{model_forward.1} parent=0 // pred_check_branch
    %25 = sbr.rel (0) target = $region29
  $region28: #{model_forward.1} parent=0 // pred_region
    _
  $region29: #{model_forward.1} parent=0 // pred_fallthru
    _
  %v26 = vld [vmem:[%s0] sm:$0xff]
  %v27 = vld [vmem:[%s0 + $0x8] sm:$0xff]
  %v28 = vld [vmem:[%s0 + $0x10] sm:$0xff]
  %v29 = vld [vmem:[%s0 + $0x18] sm:$0xff]
  %v30 = vld [vmem:[%s0 + $0x20] sm:$0xff]
  %v31 = vld [vmem:[%s0 + $0x28] sm:$0xff]
  %v32 = vld [vmem:[%s0 + $0x30] sm:$0xff]
  %v33 = vld [vmem:[%s0 + $0x38] sm:$0xff]
  %v34 = vld [vmem:[%s0 + $0x40] sm:$0xff]
  %v35 = vld [vmem:[%s0 + $0x48] sm:$0xff]
  %v36 = vld [vmem:[%s0 + $0x50] sm:$0xff]
  %v37 = vld [vmem:[%s0 + $0x58] sm:$0xff]
  %v38 = vld [vmem:[%s0 + $0x60] sm:$0xff]
  %v39 = vld [vmem:[%s0 + $0x68] sm:$0xff]
  %v40 = vld [vmem:[%s0 + $0x70] sm:$0xff]
  %v41 = vld [vmem:[%s0 + $0x78] sm:$0xff]
  %v42 = vld [vmem:[%s0 + $0x80] sm:$0xff]
  %v43 = vld [vmem:[%s0 + $0x88] sm:$0xff]
  %v44 = vld [vmem:[%s0 + $0x90] sm:$0xff]
  %v45 = vld [vmem:[%s0 + $0x98] sm:$0xff]
  %v46 = vld [vmem:[%s0 + $0xa0] sm:$0xff]
  %v47 = vld [vmem:[%s0 + $0xa8] sm:$0xff]
  %v48 = vld [vmem:[%s0 + $0xb0] sm:$0xff]
  %v49 = vld [vmem:[%s0 + $0xb8] sm:$0xff]
  %v50 = vld [vmem:[%s0 + $0xc0] sm:$0xff]
  %v51 = vld [vmem:[%s0 + $0xc8] sm:$0xff]
  %v52 = vld [vmem:[%s0 + $0xd0] sm:$0xff]
  %v53 = vld [vmem:[%s0 + $0xd8] sm:$0xff]
  %v54 = vld [vmem:[%s0 + $0xe0] sm:$0xff]
  %v55 = vld [vmem:[%s0 + $0xe8] sm:$0xff]
  %v56 = vld [vmem:[%s0 + $0xf0] sm:$0xff]
  %v57 = vld [vmem:[%s0 + $0xf8] sm:$0xff]
  %v58 = vld [vmem:[%s0 + $0x100] sm:$0xff]
  %v59 = vld [vmem:[%s0 + $0x108] sm:$0xff]
  %v60 = vld [vmem:[%s0 + $0x110] sm:$0xff]
  %v61 = vld [vmem:[%s0 + $0x118] sm:$0xff]
  %v62 = vld [vmem:[%s0 + $0x120] sm:$0xff]
  %v63 = vld [vmem:[%s0 + $0x128] sm:$0xff]
  %v64 = vld [vmem:[%s0 + $0x130] sm:$0xff]
  %v65 = vld [vmem:[%s0 + $0x138] sm:$0xff]
  %v66 = vld [vmem:[%s0 + $0x140] sm:$0xff]
  %v67 = vld [vmem:[%s0 + $0x148] sm:$0xff]
  %v68 = vld [vmem:[%s0 + $0x150] sm:$0xff]
  %v69 = vld [vmem:[%s0 + $0x158] sm:$0xff]
  %v70 = vld [vmem:[%s0 + $0x160] sm:$0xff]
  %v71 = vld [vmem:[%s0 + $0x168] sm:$0xff]
  %v72 = vld [vmem:[%s0 + $0x170] sm:$0xff]
  %v73 = vld [vmem:[%s0 + $0x178] sm:$0xff]
  %v74 = vld [vmem:[%s0 + $0x180] sm:$0xff]
  %v75 = vld [vmem:[%s0 + $0x188] sm:$0xff]
  %v76 = vld [vmem:[%s0 + $0x190] sm:$0xff]
  %v77 = vld [vmem:[%s0 + $0x198] sm:$0xff]
  %v78 = vld [vmem:[%s0 + $0x1a0] sm:$0xff]
  %v79 = vld [vmem:[%s0 + $0x1a8] sm:$0xff]
  %v80 = vld [vmem:[%s0 + $0x1b0] sm:$0xff]
  %v81 = vld [vmem:[%s0 + $0x1b8] sm:$0xff]
  %v82 = vld [vmem:[%s0 + $0x1c0] sm:$0xff]
  %v83 = vld [vmem:[%s0 + $0x1c8] sm:$0xff]
  %v84 = vld [vmem:[%s0 + $0x1d0] sm:$0xff]
  %v85 = vld [vmem:[%s0 + $0x1d8] sm:$0xff]
  %v86 = vld [vmem:[%s0 + $0x1e0] sm:$0xff]
  %v87 = vld [vmem:[%s0 + $0x1e8] sm:$0xff]
  %v88 = vld [vmem:[%s0 + $0x1f0] sm:$0xff]
  %v89 = vld [vmem:[%s0 + $0x1f8] sm:$0xff]
  %v90 = vld [vmem:[%s1] sm:$0xf]
  %v91 = vld [vmem:[%s2] sm:$0x1]
  %v93 = vlaneseq
  %v94 = vshrl.u32 %v93, 7
  %v95 = vsub.s32 0, %v94
  %v96 = vrot.slane %v91, %v95
  %vm98 = vcmask 31744
  %v100 = vsel %vm98, %v26, 0
  %v103 = vsel %vm98, %v27, 0
  %v106 = vsel %vm98, %v28, 0
  %v109 = vsel %vm98, %v29, 0
  %v112 = vsel %vm98, %v30, 0
  %v115 = vsel %vm98, %v31, 0
  %v118 = vsel %vm98, %v32, 0
  %v121 = vsel %vm98, %v33, 0
  %v124 = vsel %vm98, %v34, 0
  %v127 = vsel %vm98, %v35, 0
  %v130 = vsel %vm98, %v36, 0
  %v133 = vsel %vm98, %v37, 0
  %v136 = vsel %vm98, %v38, 0
  %v139 = vsel %vm98, %v39, 0
  %v142 = vsel %vm98, %v40, 0
  %v145 = vsel %vm98, %v41, 0
  %v148 = vsel %vm98, %v42, 0
  %v151 = vsel %vm98, %v43, 0
  %v154 = vsel %vm98, %v44, 0
  %v157 = vsel %vm98, %v45, 0
  %v160 = vsel %vm98, %v46, 0
  %v163 = vsel %vm98, %v47, 0
  %v166 = vsel %vm98, %v48, 0
  %v169 = vsel %vm98, %v49, 0
  %v172 = vsel %vm98, %v50, 0
  %v175 = vsel %vm98, %v51, 0
  %v178 = vsel %vm98, %v52, 0
  %v181 = vsel %vm98, %v53, 0
  %v184 = vsel %vm98, %v54, 0
  %v187 = vsel %vm98, %v55, 0
  %v190 = vsel %vm98, %v56, 0
  %v193 = vsel %vm98, %v57, 0
  %v196 = vsel %vm98, %v58, 0
  %v199 = vsel %vm98, %v59, 0
  %v202 = vsel %vm98, %v60, 0
  %v205 = vsel %vm98, %v61, 0
  %v208 = vsel %vm98, %v62, 0
  %v211 = vsel %vm98, %v63, 0
  %v214 = vsel %vm98, %v64, 0
  %v217 = vsel %vm98, %v65, 0
  %v220 = vsel %vm98, %v66, 0
  %v223 = vsel %vm98, %v67, 0
  %v226 = vsel %vm98, %v68, 0
  %v229 = vsel %vm98, %v69, 0
  %v232 = vsel %vm98, %v70, 0
  %v235 = vsel %vm98, %v71, 0
  %v238 = vsel %vm98, %v72, 0
  %v241 = vsel %vm98, %v73, 0
  %v244 = vsel %vm98, %v74, 0
  %v247 = vsel %vm98, %v75, 0
  %v250 = vsel %vm98, %v76, 0
  %v253 = vsel %vm98, %v77, 0
  %v256 = vsel %vm98, %v78, 0
  %v259 = vsel %vm98, %v79, 0
  %v262 = vsel %vm98, %v80, 0
  %v265 = vsel %vm98, %v81, 0
  %v268 = vsel %vm98, %v82, 0
  %v271 = vsel %vm98, %v83, 0
  %v274 = vsel %vm98, %v84, 0
  %v277 = vsel %vm98, %v85, 0
  %v280 = vsel %vm98, %v86, 0
  %v283 = vsel %vm98, %v87, 0
  %v286 = vsel %vm98, %v88, 0
  %v289 = vsel %vm98, %v89, 0
  %vm291 = vcmask 1043456
  %v293 = vsel %vm291, %v90, 0
  %295 = vmatprep.subr.mxu0 0.0
  %296 = vmatpush1.msra.mxu0 %v293
  %297 = vmatprep.subr.mxu0 0.0
  %298 = vmatpush1.msra.mxu0 0.0
  %299 = vmatprep.subr.mxu0 0.0
  %300 = vmatpush1.msra.mxu0 0.0
  %301 = vmatprep.subr.mxu0 0.0
  %302 = vmatpush1.msra.mxu0 0.0
  %303 = vmatprep.subr.mxu0 0.0
  %304 = vmatpush1.msra.mxu0 0.0
  %305 = vmatprep.subr.mxu0 0.0
  %306 = vmatpush1.msra.mxu0 0.0
  %307 = vmatprep.subr.mxu0 0.0
  %308 = vmatpush1.msra.mxu0 0.0
  %309 = vmatprep.subr.mxu0 0.0
  %310 = vmatpush1.msra.mxu0 0.0
  %311 = vmatprep.subr.mxu0 0.0
  %312 = vmatpush1.msra.mxu0 0.0
  %313 = vmatprep.subr.mxu0 0.0
  %314 = vmatpush1.msra.mxu0 0.0
  %315 = vmatprep.subr.mxu0 0.0
  %316 = vmatpush1.msra.mxu0 0.0
  %317 = vmatprep.subr.mxu0 0.0
  %318 = vmatpush1.msra.mxu0 0.0
  %319 = vmatprep.subr.mxu0 0.0
  %320 = vmatpush1.msra.mxu0 0.0
  %321 = vmatprep.subr.mxu0 0.0
  %322 = vmatpush1.msra.mxu0 0.0
  %323 = vmatprep.subr.mxu0 0.0
  %324 = vmatpush1.msra.mxu0 0.0
  %325 = vmatprep.subr.mxu0 0.0
  %326 = vmatpush1.msra.mxu0 0.0
  %327 = vmatprep.subr.mxu0 0.0
  %328 = vmatpush1.msra.mxu0 0.0
  %329 = vmatprep.subr.mxu0 0.0
  %330 = vmatpush1.msra.mxu0 0.0
  %331 = vmatprep.subr.mxu0 0.0
  %332 = vmatpush1.msra.mxu0 0.0
  %333 = vmatprep.subr.mxu0 0.0
  %334 = vmatpush1.msra.mxu0 0.0
  %335 = vmatprep.subr.mxu0 0.0
  %336 = vmatpush1.msra.mxu0 0.0
  %337 = vmatprep.subr.mxu0 0.0
  %338 = vmatpush1.msra.mxu0 0.0
  %339 = vmatprep.subr.mxu0 0.0
  %340 = vmatpush1.msra.mxu0 0.0
  %341 = vmatprep.subr.mxu0 0.0
  %342 = vmatpush1.msra.mxu0 0.0
  %343 = vmatprep.subr.mxu0 0.0
  %344 = vmatpush1.msra.mxu0 0.0
  %345 = vmatprep.subr.mxu0 0.0
  %346 = vmatpush1.msra.mxu0 0.0
  %347 = vmatprep.subr.mxu0 0.0
  %348 = vmatpush1.msra.mxu0 0.0
  %349 = vmatprep.subr.mxu0 0.0
  %350 = vmatpush1.msra.mxu0 0.0
  %351 = vmatprep.subr.mxu0 0.0
  %352 = vmatpush1.msra.mxu0 0.0
  %353 = vmatprep.subr.mxu0 0.0
  %354 = vmatpush1.msra.mxu0 0.0
  %355 = vmatprep.subr.mxu0 0.0
  %356 = vmatpush1.msra.mxu0 0.0
  %357 = vmatprep.subr.mxu0 0.0
  %358 = vmatpush1.msra.mxu0 0.0
  %359 = vmatprep.mubr.f32.mxu0 0.0
  %360 = vmatmul.mubr.f32.gmra.mrb[0].mxu0 %v100
  %v361 = vpop.f32.mrb[0].mxu0
  %v362 = vadd.f32 %v96, %v361
  %v363 = vpop.f32.mrb[0].mxu0
  %364 = vmatprep.mubr.f32.mxu0 0.0
  %365 = vmatmul.mubr.f32.gmra.mrb[0].mxu0 %v103
  %v366 = vpop.f32.mrb[0].mxu0
  %v367 = vadd.f32 %v96, %v366
  %v368 = vpop.f32.mrb[0].mxu0
  %369 = vmatprep.mubr.f32.mxu0 0.0
  %370 = vmatmul.mubr.f32.gmra.mrb[0].mxu0 %v106
  %v371 = vpop.f32.mrb[0].mxu0
  %v372 = vadd.f32 %v96, %v371
  %v373 = vpop.f32.mrb[0].mxu0
  %374 = vmatprep.mubr.f32.mxu0 0.0
  %375 = vmatmul.mubr.f32.gmra.mrb[0].mxu0 %v109
  %v376 = vpop.f32.mrb[0].mxu0
  %v377 = vadd.f32 %v96, %v376
  %v378 = vpop.f32.mrb[0].mxu0
  %379 = vmatprep.mubr.f32.mxu0 0.0
  %380 = vmatmul.mubr.f32.gmra.mrb[0].mxu0 %v112
  %v381 = vpop.f32.mrb[0].mxu0
  %v382 = vadd.f32 %v96, %v381
  %v383 = vpop.f32.mrb[0].mxu0
  %384 = vmatprep.mubr.f32.mxu0 0.0
  %385 = vmatmul.mubr.f32.gmra.mrb[0].mxu0 %v115
  %v386 = vpop.f32.mrb[0].mxu0
  %v387 = vadd.f32 %v96, %v386
  %v388 = vpop.f32.mrb[0].mxu0
  %389 = vmatprep.mubr.f32.mxu0 0.0
  %390 = vmatmul.mubr.f32.gmra.mrb[0].mxu0 %v118
  %v391 = vpop.f32.mrb[0].mxu0
  %v392 = vadd.f32 %v96, %v391
  %v393 = vpop.f32.mrb[0].mxu0
  %394 = vmatprep.mubr.f32.mxu0 0.0
  %395 = vmatmul.mubr.f32.gmra.mrb[0].mxu0 %v121
  %v396 = vpop.f32.mrb[0].mxu0
  %v397 = vadd.f32 %v96, %v396
  %v398 = vpop.f32.mrb[0].mxu0
  %399 = vmatprep.mubr.f32.mxu0 0.0
  %400 = vmatmul.mubr.f32.gmra.mrb[0].mxu0 %v124
  %v401 = vpop.f32.mrb[0].mxu0
  %v402 = vadd.f32 %v96, %v401
  %v403 = vpop.f32.mrb[0].mxu0
  %404 = vmatprep.mubr.f32.mxu0 0.0
  %405 = vmatmul.mubr.f32.gmra.mrb[0].mxu0 %v127
  %v406 = vpop.f32.mrb[0].mxu0
  %v407 = vadd.f32 %v96, %v406
  %v408 = vpop.f32.mrb[0].mxu0
  %409 = vmatprep.mubr.f32.mxu0 0.0
  %410 = vmatmul.mubr.f32.gmra.mrb[0].mxu0 %v130
  %v411 = vpop.f32.mrb[0].mxu0
  %v412 = vadd.f32 %v96, %v411
  %v413 = vpop.f32.mrb[0].mxu0
  %414 = vmatprep.mubr.f32.mxu0 0.0
  %415 = vmatmul.mubr.f32.gmra.mrb[0].mxu0 %v133
  %v416 = vpop.f32.mrb[0].mxu0
  %v417 = vadd.f32 %v96, %v416
  %v418 = vpop.f32.mrb[0].mxu0
  %419 = vmatprep.mubr.f32.mxu0 0.0
  %420 = vmatmul.mubr.f32.gmra.mrb[0].mxu0 %v136
  %v421 = vpop.f32.mrb[0].mxu0
  %v422 = vadd.f32 %v96, %v421
  %v423 = vpop.f32.mrb[0].mxu0
  %424 = vmatprep.mubr.f32.mxu0 0.0
  %425 = vmatmul.mubr.f32.gmra.mrb[0].mxu0 %v139
  %v426 = vpop.f32.mrb[0].mxu0
  %v427 = vadd.f32 %v96, %v426
  %v428 = vpop.f32.mrb[0].mxu0
  %429 = vmatprep.mubr.f32.mxu0 0.0
  %430 = vmatmul.mubr.f32.gmra.mrb[0].mxu0 %v142
  %v431 = vpop.f32.mrb[0].mxu0
  %v432 = vadd.f32 %v96, %v431
  %v433 = vpop.f32.mrb[0].mxu0
  %434 = vmatprep.mubr.f32.mxu0 0.0
  %435 = vmatmul.mubr.f32.gmra.mrb[0].mxu0 %v145
  %v436 = vpop.f32.mrb[0].mxu0
  %v437 = vadd.f32 %v96, %v436
  %v438 = vpop.f32.mrb[0].mxu0
  %439 = vmatprep.mubr.f32.mxu0 0.0
  %440 = vmatmul.mubr.f32.gmra.mrb[0].mxu0 %v148
  %v441 = vpop.f32.mrb[0].mxu0
  %v442 = vadd.f32 %v96, %v441
  %v443 = vpop.f32.mrb[0].mxu0
  %444 = vmatprep.mubr.f32.mxu0 0.0
  %445 = vmatmul.mubr.f32.gmra.mrb[0].mxu0 %v151
  %v446 = vpop.f32.mrb[0].mxu0
  %v447 = vadd.f32 %v96, %v446
  %v448 = vpop.f32.mrb[0].mxu0
  %449 = vmatprep.mubr.f32.mxu0 0.0
  %450 = vmatmul.mubr.f32.gmra.mrb[0].mxu0 %v154
  %v451 = vpop.f32.mrb[0].mxu0
  %v452 = vadd.f32 %v96, %v451
  %v453 = vpop.f32.mrb[0].mxu0
  %454 = vmatprep.mubr.f32.mxu0 0.0
  %455 = vmatmul.mubr.f32.gmra.mrb[0].mxu0 %v157
  %v456 = vpop.f32.mrb[0].mxu0
  %v457 = vadd.f32 %v96, %v456
  %v458 = vpop.f32.mrb[0].mxu0
  %459 = vmatprep.mubr.f32.mxu0 0.0
  %460 = vmatmul.mubr.f32.gmra.mrb[0].mxu0 %v160
  %v461 = vpop.f32.mrb[0].mxu0
  %v462 = vadd.f32 %v96, %v461
  %v463 = vpop.f32.mrb[0].mxu0
  %464 = vmatprep.mubr.f32.mxu0 0.0
  %465 = vmatmul.mubr.f32.gmra.mrb[0].mxu0 %v163
  %v466 = vpop.f32.mrb[0].mxu0
  %v467 = vadd.f32 %v96, %v466
  %v468 = vpop.f32.mrb[0].mxu0
  %469 = vmatprep.mubr.f32.mxu0 0.0
  %470 = vmatmul.mubr.f32.gmra.mrb[0].mxu0 %v166
  %v471 = vpop.f32.mrb[0].mxu0
  %v472 = vadd.f32 %v96, %v471
  %v473 = vpop.f32.mrb[0].mxu0
  %474 = vmatprep.mubr.f32.mxu0 0.0
  %475 = vmatmul.mubr.f32.gmra.mrb[0].mxu0 %v169
  %v476 = vpop.f32.mrb[0].mxu0
  %v477 = vadd.f32 %v96, %v476
  %v478 = vpop.f32.mrb[0].mxu0
  %479 = vmatprep.mubr.f32.mxu0 0.0
  %480 = vmatmul.mubr.f32.gmra.mrb[0].mxu0 %v172
  %v481 = vpop.f32.mrb[0].mxu0
  %v482 = vadd.f32 %v96, %v481
  %v483 = vpop.f32.mrb[0].mxu0
  %484 = vmatprep.mubr.f32.mxu0 0.0
  %485 = vmatmul.mubr.f32.gmra.mrb[0].mxu0 %v175
  %v486 = vpop.f32.mrb[0].mxu0
  %v487 = vadd.f32 %v96, %v486
  %v488 = vpop.f32.mrb[0].mxu0
  %489 = vmatprep.mubr.f32.mxu0 0.0
  %490 = vmatmul.mubr.f32.gmra.mrb[0].mxu0 %v178
  %v491 = vpop.f32.mrb[0].mxu0
  %v492 = vadd.f32 %v96, %v491
  %v493 = vpop.f32.mrb[0].mxu0
  %494 = vmatprep.mubr.f32.mxu0 0.0
  %495 = vmatmul.mubr.f32.gmra.mrb[0].mxu0 %v181
  %v496 = vpop.f32.mrb[0].mxu0
  %v497 = vadd.f32 %v96, %v496
  %v498 = vpop.f32.mrb[0].mxu0
  %499 = vmatprep.mubr.f32.mxu0 0.0
  %500 = vmatmul.mubr.f32.gmra.mrb[0].mxu0 %v184
  %v501 = vpop.f32.mrb[0].mxu0
  %v502 = vadd.f32 %v96, %v501
  %v503 = vpop.f32.mrb[0].mxu0
  %504 = vmatprep.mubr.f32.mxu0 0.0
  %505 = vmatmul.mubr.f32.gmra.mrb[0].mxu0 %v187
  %v506 = vpop.f32.mrb[0].mxu0
  %v507 = vadd.f32 %v96, %v506
  %v508 = vpop.f32.mrb[0].mxu0
  %509 = vmatprep.mubr.f32.mxu0 0.0
  %510 = vmatmul.mubr.f32.gmra.mrb[0].mxu0 %v190
  %v511 = vpop.f32.mrb[0].mxu0
  %v512 = vadd.f32 %v96, %v511
  %v513 = vpop.f32.mrb[0].mxu0
  %514 = vmatprep.mubr.f32.mxu0 0.0
  %515 = vmatmul.mubr.f32.gmra.mrb[0].mxu0 %v193
  %v516 = vpop.f32.mrb[0].mxu0
  %v517 = vadd.f32 %v96, %v516
  %v518 = vpop.f32.mrb[0].mxu0
  %519 = vmatprep.mubr.f32.mxu0 0.0
  %520 = vmatmul.mubr.f32.gmra.mrb[0].mxu0 %v196
  %v521 = vpop.f32.mrb[0].mxu0
  %v522 = vadd.f32 %v96, %v521
  %v523 = vpop.f32.mrb[0].mxu0
  %524 = vmatprep.mubr.f32.mxu0 0.0
  %525 = vmatmul.mubr.f32.gmra.mrb[0].mxu0 %v199
  %v526 = vpop.f32.mrb[0].mxu0
  %v527 = vadd.f32 %v96, %v526
  %v528 = vpop.f32.mrb[0].mxu0
  %529 = vmatprep.mubr.f32.mxu0 0.0
  %530 = vmatmul.mubr.f32.gmra.mrb[0].mxu0 %v202
  %v531 = vpop.f32.mrb[0].mxu0
  %v532 = vadd.f32 %v96, %v531
  %v533 = vpop.f32.mrb[0].mxu0
  %534 = vmatprep.mubr.f32.mxu0 0.0
  %535 = vmatmul.mubr.f32.gmra.mrb[0].mxu0 %v205
  %v536 = vpop.f32.mrb[0].mxu0
  %v537 = vadd.f32 %v96, %v536
  %v538 = vpop.f32.mrb[0].mxu0
  %539 = vmatprep.mubr.f32.mxu0 0.0
  %540 = vmatmul.mubr.f32.gmra.mrb[0].mxu0 %v208
  %v541 = vpop.f32.mrb[0].mxu0
  %v542 = vadd.f32 %v96, %v541
  %v543 = vpop.f32.mrb[0].mxu0
  %544 = vmatprep.mubr.f32.mxu0 0.0
  %545 = vmatmul.mubr.f32.gmra.mrb[0].mxu0 %v211
  %v546 = vpop.f32.mrb[0].mxu0
  %v547 = vadd.f32 %v96, %v546
  %v548 = vpop.f32.mrb[0].mxu0
  %549 = vmatprep.mubr.f32.mxu0 0.0
  %550 = vmatmul.mubr.f32.gmra.mrb[0].mxu0 %v214
  %v551 = vpop.f32.mrb[0].mxu0
  %v552 = vadd.f32 %v96, %v551
  %v553 = vpop.f32.mrb[0].mxu0
  %554 = vmatprep.mubr.f32.mxu0 0.0
  %555 = vmatmul.mubr.f32.gmra.mrb[0].mxu0 %v217
  %v556 = vpop.f32.mrb[0].mxu0
  %v557 = vadd.f32 %v96, %v556
  %v558 = vpop.f32.mrb[0].mxu0
  %559 = vmatprep.mubr.f32.mxu0 0.0
  %560 = vmatmul.mubr.f32.gmra.mrb[0].mxu0 %v220
  %v561 = vpop.f32.mrb[0].mxu0
  %v562 = vadd.f32 %v96, %v561
  %v563 = vpop.f32.mrb[0].mxu0
  %564 = vmatprep.mubr.f32.mxu0 0.0
  %565 = vmatmul.mubr.f32.gmra.mrb[0].mxu0 %v223
  %v566 = vpop.f32.mrb[0].mxu0
  %v567 = vadd.f32 %v96, %v566
  %v568 = vpop.f32.mrb[0].mxu0
  %569 = vmatprep.mubr.f32.mxu0 0.0
  %570 = vmatmul.mubr.f32.gmra.mrb[0].mxu0 %v226
  %v571 = vpop.f32.mrb[0].mxu0
  %v572 = vadd.f32 %v96, %v571
  %v573 = vpop.f32.mrb[0].mxu0
  %574 = vmatprep.mubr.f32.mxu0 0.0
  %575 = vmatmul.mubr.f32.gmra.mrb[0].mxu0 %v229
  %v576 = vpop.f32.mrb[0].mxu0
  %v577 = vadd.f32 %v96, %v576
  %v578 = vpop.f32.mrb[0].mxu0
  %579 = vmatprep.mubr.f32.mxu0 0.0
  %580 = vmatmul.mubr.f32.gmra.mrb[0].mxu0 %v232
  %v581 = vpop.f32.mrb[0].mxu0
  %v582 = vadd.f32 %v96, %v581
  %v583 = vpop.f32.mrb[0].mxu0
  %584 = vmatprep.mubr.f32.mxu0 0.0
  %585 = vmatmul.mubr.f32.gmra.mrb[0].mxu0 %v235
  %v586 = vpop.f32.mrb[0].mxu0
  %v587 = vadd.f32 %v96, %v586
  %v588 = vpop.f32.mrb[0].mxu0
  %589 = vmatprep.mubr.f32.mxu0 0.0
  %590 = vmatmul.mubr.f32.gmra.mrb[0].mxu0 %v238
  %v591 = vpop.f32.mrb[0].mxu0
  %v592 = vadd.f32 %v96, %v591
  %v593 = vpop.f32.mrb[0].mxu0
  %594 = vmatprep.mubr.f32.mxu0 0.0
  %595 = vmatmul.mubr.f32.gmra.mrb[0].mxu0 %v241
  %v596 = vpop.f32.mrb[0].mxu0
  %v597 = vadd.f32 %v96, %v596
  %v598 = vpop.f32.mrb[0].mxu0
  %599 = vmatprep.mubr.f32.mxu0 0.0
  %600 = vmatmul.mubr.f32.gmra.mrb[0].mxu0 %v244
  %v601 = vpop.f32.mrb[0].mxu0
  %v602 = vadd.f32 %v96, %v601
  %v603 = vpop.f32.mrb[0].mxu0
  %604 = vmatprep.mubr.f32.mxu0 0.0
  %605 = vmatmul.mubr.f32.gmra.mrb[0].mxu0 %v247
  %v606 = vpop.f32.mrb[0].mxu0
  %v607 = vadd.f32 %v96, %v606
  %v608 = vpop.f32.mrb[0].mxu0
  %609 = vmatprep.mubr.f32.mxu0 0.0
  %610 = vmatmul.mubr.f32.gmra.mrb[0].mxu0 %v250
  %v611 = vpop.f32.mrb[0].mxu0
  %v612 = vadd.f32 %v96, %v611
  %v613 = vpop.f32.mrb[0].mxu0
  %614 = vmatprep.mubr.f32.mxu0 0.0
  %615 = vmatmul.mubr.f32.gmra.mrb[0].mxu0 %v253
  %v616 = vpop.f32.mrb[0].mxu0
  %v617 = vadd.f32 %v96, %v616
  %v618 = vpop.f32.mrb[0].mxu0
  %619 = vmatprep.mubr.f32.mxu0 0.0
  %620 = vmatmul.mubr.f32.gmra.mrb[0].mxu0 %v256
  %v621 = vpop.f32.mrb[0].mxu0
  %v622 = vadd.f32 %v96, %v621
  %v623 = vpop.f32.mrb[0].mxu0
  %624 = vmatprep.mubr.f32.mxu0 0.0
  %625 = vmatmul.mubr.f32.gmra.mrb[0].mxu0 %v259
  %v626 = vpop.f32.mrb[0].mxu0
  %v627 = vadd.f32 %v96, %v626
  %v628 = vpop.f32.mrb[0].mxu0
  %629 = vmatprep.mubr.f32.mxu0 0.0
  %630 = vmatmul.mubr.f32.gmra.mrb[0].mxu0 %v262
  %v631 = vpop.f32.mrb[0].mxu0
  %v632 = vadd.f32 %v96, %v631
  %v633 = vpop.f32.mrb[0].mxu0
  %634 = vmatprep.mubr.f32.mxu0 0.0
  %635 = vmatmul.mubr.f32.gmra.mrb[0].mxu0 %v265
  %v636 = vpop.f32.mrb[0].mxu0
  %v637 = vadd.f32 %v96, %v636
  %v638 = vpop.f32.mrb[0].mxu0
  %639 = vmatprep.mubr.f32.mxu0 0.0
  %640 = vmatmul.mubr.f32.gmra.mrb[0].mxu0 %v268
  %v641 = vpop.f32.mrb[0].mxu0
  %v642 = vadd.f32 %v96, %v641
  %v643 = vpop.f32.mrb[0].mxu0
  %644 = vmatprep.mubr.f32.mxu0 0.0
  %645 = vmatmul.mubr.f32.gmra.mrb[0].mxu0 %v271
  %v646 = vpop.f32.mrb[0].mxu0
  %v647 = vadd.f32 %v96, %v646
  %v648 = vpop.f32.mrb[0].mxu0
  %649 = vmatprep.mubr.f32.mxu0 0.0
  %650 = vmatmul.mubr.f32.gmra.mrb[0].mxu0 %v274
  %v651 = vpop.f32.mrb[0].mxu0
  %v652 = vadd.f32 %v96, %v651
  %v653 = vpop.f32.mrb[0].mxu0
  %654 = vmatprep.mubr.f32.mxu0 0.0
  %655 = vmatmul.mubr.f32.gmra.mrb[0].mxu0 %v277
  %v656 = vpop.f32.mrb[0].mxu0
  %v657 = vadd.f32 %v96, %v656
  %v658 = vpop.f32.mrb[0].mxu0
  %659 = vmatprep.mubr.f32.mxu0 0.0
  %660 = vmatmul.mubr.f32.gmra.mrb[0].mxu0 %v280
  %v661 = vpop.f32.mrb[0].mxu0
  %v662 = vadd.f32 %v96, %v661
  %v663 = vpop.f32.mrb[0].mxu0
  %664 = vmatprep.mubr.f32.mxu0 0.0
  %665 = vmatmul.mubr.f32.gmra.mrb[0].mxu0 %v283
  %v666 = vpop.f32.mrb[0].mxu0
  %v667 = vadd.f32 %v96, %v666
  %v668 = vpop.f32.mrb[0].mxu0
  %669 = vmatprep.mubr.f32.mxu0 0.0
  %670 = vmatmul.mubr.f32.gmra.mrb[0].mxu0 %v286
  %v671 = vpop.f32.mrb[0].mxu0
  %v672 = vadd.f32 %v96, %v671
  %v673 = vpop.f32.mrb[0].mxu0
  %674 = vmatprep.mubr.f32.mxu0 0.0
  %675 = vmatmul.mubr.f32.gmra.mrb[0].mxu0 %v289
  %v676 = vpop.f32.mrb[0].mxu0
  %v677 = vadd.f32 %v96, %v676
  %v678 = vpop.f32.mrb[0].mxu0
  %679 = vdwg.mxu0
  %v680 = vmax.f32 %v362, 0.0
  %v681 = vmax.f32 %v367, 0.0
  %v682 = vmax.f32 %v372, 0.0
  %v683 = vmax.f32 %v377, 0.0
  %v684 = vmax.f32 %v382, 0.0
  %v685 = vmax.f32 %v387, 0.0
  %v686 = vmax.f32 %v392, 0.0
  %v687 = vmax.f32 %v397, 0.0
  %v688 = vmax.f32 %v402, 0.0
  %v689 = vmax.f32 %v407, 0.0
  %v690 = vmax.f32 %v412, 0.0
  %v691 = vmax.f32 %v417, 0.0
  %v692 = vmax.f32 %v422, 0.0
  %v693 = vmax.f32 %v427, 0.0
  %v694 = vmax.f32 %v432, 0.0
  %v695 = vmax.f32 %v437, 0.0
  %v696 = vmax.f32 %v442, 0.0
  %v697 = vmax.f32 %v447, 0.0
  %v698 = vmax.f32 %v452, 0.0
  %v699 = vmax.f32 %v457, 0.0
  %v700 = vmax.f32 %v462, 0.0
  %v701 = vmax.f32 %v467, 0.0
  %v702 = vmax.f32 %v472, 0.0
  %v703 = vmax.f32 %v477, 0.0
  %v704 = vmax.f32 %v482, 0.0
  %v705 = vmax.f32 %v487, 0.0
  %v706 = vmax.f32 %v492, 0.0
  %v707 = vmax.f32 %v497, 0.0
  %v708 = vmax.f32 %v502, 0.0
  %v709 = vmax.f32 %v507, 0.0
  %v710 = vmax.f32 %v512, 0.0
  %v711 = vmax.f32 %v517, 0.0
  %v712 = vmax.f32 %v522, 0.0
  %v713 = vmax.f32 %v527, 0.0
  %v714 = vmax.f32 %v532, 0.0
  %v715 = vmax.f32 %v537, 0.0
  %v716 = vmax.f32 %v542, 0.0
  %v717 = vmax.f32 %v547, 0.0
  %v718 = vmax.f32 %v552, 0.0
  %v719 = vmax.f32 %v557, 0.0
  %v720 = vmax.f32 %v562, 0.0
  %v721 = vmax.f32 %v567, 0.0
  %v722 = vmax.f32 %v572, 0.0
  %v723 = vmax.f32 %v577, 0.0
  %v724 = vmax.f32 %v582, 0.0
  %v725 = vmax.f32 %v587, 0.0
  %v726 = vmax.f32 %v592, 0.0
  %v727 = vmax.f32 %v597, 0.0
  %v728 = vmax.f32 %v602, 0.0
  %v729 = vmax.f32 %v607, 0.0
  %v730 = vmax.f32 %v612, 0.0
  %v731 = vmax.f32 %v617, 0.0
  %v732 = vmax.f32 %v622, 0.0
  %v733 = vmax.f32 %v627, 0.0
  %v734 = vmax.f32 %v632, 0.0
  %v735 = vmax.f32 %v637, 0.0
  %v736 = vmax.f32 %v642, 0.0
  %v737 = vmax.f32 %v647, 0.0
  %v738 = vmax.f32 %v652, 0.0
  %v739 = vmax.f32 %v657, 0.0
  %v740 = vmax.f32 %v662, 0.0
  %v741 = vmax.f32 %v667, 0.0
  %v742 = vmax.f32 %v672, 0.0
  %v743 = vmax.f32 %v677, 0.0
  %v744 = vmax.f32 %v680, %v681
  %v745 = vmax.f32 %v744, %v688
  %v746 = vmax.f32 %v745, %v689
  %v747 = vmax.f32 %v682, %v683
  %v748 = vmax.f32 %v747, %v690
  %v749 = vmax.f32 %v748, %v691
  %v750 = vmax.f32 %v684, %v685
  %v751 = vmax.f32 %v750, %v692
  %v752 = vmax.f32 %v751, %v693
  %v753 = vmax.f32 %v686, %v687
  %v754 = vmax.f32 %v753, %v694
  %v755 = vmax.f32 %v754, %v695
  %v756 = vmax.f32 %v696, %v697
  %v757 = vmax.f32 %v756, %v704
  %v758 = vmax.f32 %v757, %v705
  %v759 = vmax.f32 %v698, %v699
  %v760 = vmax.f32 %v759, %v706
  %v761 = vmax.f32 %v760, %v707
  %v762 = vmax.f32 %v700, %v701
  %v763 = vmax.f32 %v762, %v708
  %v764 = vmax.f32 %v763, %v709
  %v765 = vmax.f32 %v702, %v703
  %v766 = vmax.f32 %v765, %v710
  %v767 = vmax.f32 %v766, %v711
  %v768 = vmax.f32 %v712, %v713
  %v769 = vmax.f32 %v768, %v720
  %v770 = vmax.f32 %v769, %v721
  %v771 = vmax.f32 %v714, %v715
  %v772 = vmax.f32 %v771, %v722
  %v773 = vmax.f32 %v772, %v723
  %v774 = vmax.f32 %v716, %v717
  %v775 = vmax.f32 %v774, %v724
  %v776 = vmax.f32 %v775, %v725
  %v777 = vmax.f32 %v718, %v719
  %v778 = vmax.f32 %v777, %v726
  %v779 = vmax.f32 %v778, %v727
  %v780 = vmax.f32 %v728, %v729
  %v781 = vmax.f32 %v780, %v736
  %v782 = vmax.f32 %v781, %v737
  %v783 = vmax.f32 %v730, %v731
  %v784 = vmax.f32 %v783, %v738
  %v785 = vmax.f32 %v784, %v739
  %v786 = vmax.f32 %v732, %v733
  %v787 = vmax.f32 %v786, %v740
  %v788 = vmax.f32 %v787, %v741
  %v789 = vmax.f32 %v734, %v735
  %v790 = vmax.f32 %v789, %v742
  %v791 = vmax.f32 %v790, %v743
  %793 = vrot.lane.b32.xlu0 %v749, 4
  %v794 = vpop.permute.xlu0 %793
  %797 = vrot.lane.b32.xlu0 %v758, 8
  %v798 = vpop.permute.xlu0 %797
  %801 = vrot.lane.b32.xlu0 %v761, 12
  %v802 = vpop.permute.xlu0 %801
  %v804 = vsel %vm98, %v746, %v794
  %vm805 = vcmask 64512
  %v806 = vsel %vm805, %v804, %v798
  %vm807 = vcmask 97280
  %v808 = vsel %vm807, %v806, %v802
  %810 = vrot.lane.b32.xlu0 %v755, 4
  %v811 = vpop.permute.xlu0 %810
  %814 = vrot.lane.b32.xlu0 %v764, 8
  %v815 = vpop.permute.xlu0 %814
  %818 = vrot.lane.b32.xlu0 %v767, 12
  %v819 = vpop.permute.xlu0 %818
  %v821 = vsel %vm98, %v752, %v811
  %v822 = vsel %vm805, %v821, %v815
  %v823 = vsel %vm807, %v822, %v819
  %825 = vrot.lane.b32.xlu0 %v773, 4
  %v826 = vpop.permute.xlu0 %825
  %829 = vrot.lane.b32.xlu0 %v782, 8
  %v830 = vpop.permute.xlu0 %829
  %833 = vrot.lane.b32.xlu0 %v785, 12
  %v834 = vpop.permute.xlu0 %833
  %v836 = vsel %vm98, %v770, %v826
  %v837 = vsel %vm805, %v836, %v830
  %v838 = vsel %vm807, %v837, %v834
  %840 = vrot.lane.b32.xlu0 %v779, 4
  %v841 = vpop.permute.xlu0 %840
  %844 = vrot.lane.b32.xlu0 %v788, 8
  %v845 = vpop.permute.xlu0 %844
  %848 = vrot.lane.b32.xlu0 %v791, 12
  %v849 = vpop.permute.xlu0 %848
  %v851 = vsel %vm98, %v776, %v841
  %v852 = vsel %vm805, %v851, %v845
  %v853 = vsel %vm807, %v852, %v849
  %v854 = vld [vmem:[%s3] sm:$0xff]
  %v855 = vld [vmem:[%s3 + $0x8] sm:$0xff]
  %v856 = vld [vmem:[%s4] sm:$0x1]
  %v858 = vlaneseq
  %v859 = vshrl.u32 %v858, 7
  %v860 = vsub.s32 0, %v859
  %v861 = vrot.slane %v856, %v860
  %vm863 = vcmask 130048
  %v865 = vsel %vm863, %v808, 0
  %v868 = vsel %vm863, %v823, 0
  %v871 = vsel %vm863, %v838, 0
  %v874 = vsel %vm863, %v853, 0
  %876 = vmatprep.subr.mxu0 0.0
  %877 = vmatpush1.msra.mxu0 %v854
  %878 = vmatprep.subr.mxu0 0.0
  %879 = vmatpush1.msra.mxu0 %v855
  %880 = vmatprep.subr.mxu0 0.0
  %881 = vmatpush1.msra.mxu0 0.0
  %882 = vmatprep.subr.mxu0 0.0
  %883 = vmatpush1.msra.mxu0 0.0
  %884 = vmatprep.subr.mxu0 0.0
  %885 = vmatpush1.msra.mxu0 0.0
  %886 = vmatprep.subr.mxu0 0.0
  %887 = vmatpush1.msra.mxu0 0.0
  %888 = vmatprep.subr.mxu0 0.0
  %889 = vmatpush1.msra.mxu0 0.0
  %890 = vmatprep.subr.mxu0 0.0
  %891 = vmatpush1.msra.mxu0 0.0
  %892 = vmatprep.subr.mxu0 0.0
  %893 = vmatpush1.msra.mxu0 0.0
  %894 = vmatprep.subr.mxu0 0.0
  %895 = vmatpush1.msra.mxu0 0.0
  %896 = vmatprep.subr.mxu0 0.0
  %897 = vmatpush1.msra.mxu0 0.0
  %898 = vmatprep.subr.mxu0 0.0
  %899 = vmatpush1.msra.mxu0 0.0
  %900 = vmatprep.subr.mxu0 0.0
  %901 = vmatpush1.msra.mxu0 0.0
  %902 = vmatprep.subr.mxu0 0.0
  %903 = vmatpush1.msra.mxu0 0.0
  %904 = vmatprep.subr.mxu0 0.0
  %905 = vmatpush1.msra.mxu0 0.0
  %906 = vmatprep.subr.mxu0 0.0
  %907 = vmatpush1.msra.mxu0 0.0
  %908 = vmatprep.subr.mxu0 0.0
  %909 = vmatpush1.msra.mxu0 0.0
  %910 = vmatprep.subr.mxu0 0.0
  %911 = vmatpush1.msra.mxu0 0.0
  %912 = vmatprep.subr.mxu0 0.0
  %913 = vmatpush1.msra.mxu0 0.0
  %914 = vmatprep.subr.mxu0 0.0
  %915 = vmatpush1.msra.mxu0 0.0
  %916 = vmatprep.subr.mxu0 0.0
  %917 = vmatpush1.msra.mxu0 0.0
  %918 = vmatprep.subr.mxu0 0.0
  %919 = vmatpush1.msra.mxu0 0.0
  %920 = vmatprep.subr.mxu0 0.0
  %921 = vmatpush1.msra.mxu0 0.0
  %922 = vmatprep.subr.mxu0 0.0
  %923 = vmatpush1.msra.mxu0 0.0
  %924 = vmatprep.subr.mxu0 0.0
  %925 = vmatpush1.msra.mxu0 0.0
  %926 = vmatprep.subr.mxu0 0.0
  %927 = vmatpush1.msra.mxu0 0.0
  %928 = vmatprep.subr.mxu0 0.0
  %929 = vmatpush1.msra.mxu0 0.0
  %930 = vmatprep.subr.mxu0 0.0
  %931 = vmatpush1.msra.mxu0 0.0
  %932 = vmatprep.subr.mxu0 0.0
  %933 = vmatpush1.msra.mxu0 0.0
  %934 = vmatprep.subr.mxu0 0.0
  %935 = vmatpush1.msra.mxu0 0.0
  %936 = vmatprep.subr.mxu0 0.0
  %937 = vmatpush1.msra.mxu0 0.0
  %938 = vmatprep.subr.mxu0 0.0
  %939 = vmatpush1.msra.mxu0 0.0
  %940 = vmatprep.mubr.f32.mxu0 0.0
  %941 = vmatmul.mubr.f32.gmra.mrb[0].mxu0 %v865
  %v942 = vpop.f32.mrb[0].mxu0
  %v943 = vadd.f32 %v861, %v942
  %v944 = vpop.f32.mrb[0].mxu0
  %945 = vmatprep.mubr.f32.mxu0 0.0
  %946 = vmatmul.mubr.f32.gmra.mrb[0].mxu0 %v868
  %v947 = vpop.f32.mrb[0].mxu0
  %v948 = vadd.f32 %v861, %v947
  %v949 = vpop.f32.mrb[0].mxu0
  %950 = vmatprep.mubr.f32.mxu0 0.0
  %951 = vmatmul.mubr.f32.gmra.mrb[0].mxu0 %v871
  %v952 = vpop.f32.mrb[0].mxu0
  %v953 = vadd.f32 %v861, %v952
  %v954 = vpop.f32.mrb[0].mxu0
  %955 = vmatprep.mubr.f32.mxu0 0.0
  %956 = vmatmul.mubr.f32.gmra.mrb[0].mxu0 %v874
  %v957 = vpop.f32.mrb[0].mxu0
  %v958 = vadd.f32 %v861, %v957
  %v959 = vpop.f32.mrb[0].mxu0
  %960 = vdwg.mxu0
  %v961 = vmax.f32 %v943, 0.0
  %v962 = vmax.f32 %v948, 0.0
  %v963 = vmax.f32 %v953, 0.0
  %v964 = vmax.f32 %v958, 0.0
  %v965 = vmax.f32 %v961, %v962
  %v966 = vmax.f32 %v965, %v963
  %v967 = vmax.f32 %v966, %v964
  %v968 = vld [vmem:[%s5] sm:$0xff]
  %v969 = vld [vmem:[%s5 + $0x8] sm:$0xff]
  %v970 = vld [vmem:[%s6] sm:$0x1]
  %v972 = vlaneseq
  %v973 = vshrl.u32 %v972, 7
  %v974 = vsub.s32 0, %v973
  %v975 = vrot.slane %v970, %v974
  %v978 = vsel %vm863, %v967, 0
  %980 = vmatprep.subr.mxu0 0.0
  %981 = vmatpush1.msra.mxu0 %v968
  %982 = vmatprep.subr.mxu0 0.0
  %983 = vmatpush1.msra.mxu0 %v969
  %984 = vmatprep.subr.mxu0 0.0
  %985 = vmatpush1.msra.mxu0 0.0
  %986 = vmatprep.subr.mxu0 0.0
  %987 = vmatpush1.msra.mxu0 0.0
  %988 = vmatprep.subr.mxu0 0.0
  %989 = vmatpush1.msra.mxu0 0.0
  %990 = vmatprep.subr.mxu0 0.0
  %991 = vmatpush1.msra.mxu0 0.0
  %992 = vmatprep.subr.mxu0 0.0
  %993 = vmatpush1.msra.mxu0 0.0
  %994 = vmatprep.subr.mxu0 0.0
  %995 = vmatpush1.msra.mxu0 0.0
  %996 = vmatprep.subr.mxu0 0.0
  %997 = vmatpush1.msra.mxu0 0.0
  %998 = vmatprep.subr.mxu0 0.0
  %999 = vmatpush1.msra.mxu0 0.0
  %1000 = vmatprep.subr.mxu0 0.0
  %1001 = vmatpush1.msra.mxu0 0.0
  %1002 = vmatprep.subr.mxu0 0.0
  %1003 = vmatpush1.msra.mxu0 0.0
  %1004 = vmatprep.subr.mxu0 0.0
  %1005 = vmatpush1.msra.mxu0 0.0
  %1006 = vmatprep.subr.mxu0 0.0
  %1007 = vmatpush1.msra.mxu0 0.0
  %1008 = vmatprep.subr.mxu0 0.0
  %1009 = vmatpush1.msra.mxu0 0.0
  %1010 = vmatprep.subr.mxu0 0.0
  %1011 = vmatpush1.msra.mxu0 0.0
  %1012 = vmatprep.subr.mxu0 0.0
  %1013 = vmatpush1.msra.mxu0 0.0
  %1014 = vmatprep.subr.mxu0 0.0
  %1015 = vmatpush1.msra.mxu0 0.0
  %1016 = vmatprep.subr.mxu0 0.0
  %1017 = vmatpush1.msra.mxu0 0.0
  %1018 = vmatprep.subr.mxu0 0.0
  %1019 = vmatpush1.msra.mxu0 0.0
  %1020 = vmatprep.subr.mxu0 0.0
  %1021 = vmatpush1.msra.mxu0 0.0
  %1022 = vmatprep.subr.mxu0 0.0
  %1023 = vmatpush1.msra.mxu0 0.0
  %1024 = vmatprep.subr.mxu0 0.0
  %1025 = vmatpush1.msra.mxu0 0.0
  %1026 = vmatprep.subr.mxu0 0.0
  %1027 = vmatpush1.msra.mxu0 0.0
  %1028 = vmatprep.subr.mxu0 0.0
  %1029 = vmatpush1.msra.mxu0 0.0
  %1030 = vmatprep.subr.mxu0 0.0
  %1031 = vmatpush1.msra.mxu0 0.0
  %1032 = vmatprep.subr.mxu0 0.0
  %1033 = vmatpush1.msra.mxu0 0.0
  %1034 = vmatprep.subr.mxu0 0.0
  %1035 = vmatpush1.msra.mxu0 0.0
  %1036 = vmatprep.subr.mxu0 0.0
  %1037 = vmatpush1.msra.mxu0 0.0
  %1038 = vmatprep.subr.mxu0 0.0
  %1039 = vmatpush1.msra.mxu0 0.0
  %1040 = vmatprep.subr.mxu0 0.0
  %1041 = vmatpush1.msra.mxu0 0.0
  %1042 = vmatprep.subr.mxu0 0.0
  %1043 = vmatpush1.msra.mxu0 0.0
  %1044 = vmatprep.mubr.f32.mxu0 0.0
  %1045 = vmatmul.mubr.f32.gmra.mrb[0].mxu0 %v978
  %v1046 = vpop.f32.mrb[0].mxu0
  %v1047 = vadd.f32 %v975, %v1046
  %v1048 = vpop.f32.mrb[0].mxu0
  %1049 = vdwg.mxu0
  %vm1050 = vcmask 80896
  %1051 = vst.msk [vmem:[%s7] sm:$0xff] %vm1050, %v1047
  // Predicated region
  $region30: #{model_forward.1} parent=0 // pred_check
    _
  $region31: #{model_forward.1} parent=0 // pred_check_branch
    %1053 = sbr.rel (0) target = $region33
  $region32: #{model_forward.1} parent=0 // pred_region
    _
  $region33: #{model_forward.1} parent=0 // pred_fallthru
    _
  // Predicated region
  $region34: #{model_forward.1} parent=0 // pred_check
    _
  $region35: #{model_forward.1} parent=0 // pred_check_branch
    %1055 = sbr.rel (0) target = $region37
  $region36: #{model_forward.1} parent=0 // pred_region
    _
  $region37: #{model_forward.1} parent=0 // pred_fallthru
    _

</llo_original>
